<compile_context>
chip_gen: v7x
topology: tpu7x:2x2x1
jax: 0.10.0
libtpu: 0.0.40
codegen_flags: <defaults>
</compile_context>

<pallas_src>
import functools

import jax
import jax.numpy as jnp
from jax.experimental import pallas as pl
from jax.experimental.pallas import tpu as pltpu


def _round_up(v, m):
    return ((v + m - 1) // m) * m


def prolonet_kernel(x_ref, wt_ref, c_ref, alpha_ref, lmask_ref, rmask_ref,
                    const_ref, ap_ref, out_ref, *, is_value):
    alpha = alpha_ref[0, 0]                               # SMEM scalar
    x = x_ref[...]                                        # (TB, D)

    # Per-node linear screening on the MXU: z[b, n] = (x @ W^T - c) * alpha.
    pre = jnp.dot(x, wt_ref[...], preferred_element_type=jnp.float32)
    z = (pre - c_ref[...]) * alpha                        # (TB, N_pad), f32

    # Numerically stable log-sigmoid of z and of -z (shared exp/log term):
    #   log sigmoid(z)  = min(z, 0)  - log(1 + exp(-|z|))
    #   log sigmoid(-z) = min(-z, 0) - log(1 + exp(-|z|))
    log1p_term = jnp.log(1.0 + jnp.exp(-jnp.abs(z)))
    log_sig = jnp.minimum(z, 0.0) - log1p_term            # (TB, N_pad)
    log_1ms = jnp.minimum(-z, 0.0) - log1p_term           # (TB, N_pad)

    # Leaf log-probabilities via two MXU matmuls against the 0/1 path masks
    # (replaces the per-node VPU loop).  Zero-padded nodes/leaves contribute 0.
    log_probs = (
        jnp.dot(log_sig.astype(lmask_ref.dtype), lmask_ref[...],
                preferred_element_type=jnp.float32)
        + jnp.dot(log_1ms.astype(rmask_ref.dtype), rmask_ref[...],
                  preferred_element_type=jnp.float32)
        + const_ref[...])                                 # (TB, L_pad)
    probs = jnp.exp(log_probs)                            # (TB, L_pad)

    # Leaf-probability-weighted action logits; narrow (TB, A) output slab.
    logits = jnp.dot(probs.astype(ap_ref.dtype), ap_ref[...],
                     preferred_element_type=jnp.float32)  # (TB, A)

    if is_value:
        out_ref[...] = logits
    else:
        # Exact softmax (the approx reciprocal previously broke the 1e-3 check).
        m = jnp.max(logits, axis=-1, keepdims=True)
        e = jnp.exp(logits - m)
        out_ref[...] = e / jnp.sum(e, axis=-1, keepdims=True)


def prolonet_forward(x, weights, comparators, alpha, lps, rps, action_probs,
                     *, batch_tile=256, is_value=False, mxu_dtype=jnp.float32,
                     vmem_limit_bytes=32 * 1024 * 1024):
    B, D = x.shape
    N, L = lps.shape
    A = action_probs.shape[1]
    f32 = jnp.float32

    # --- pad tree dims to lane-dense multiples of 128 -----------------------
    n_pad = _round_up(N, 128)
    l_pad = _round_up(L, 128)

    wt = jnp.zeros((D, n_pad), f32).at[:, :N].set(weights.astype(f32).T)
    c_row = jnp.zeros((1, n_pad), f32).at[0, :N].set(
        comparators.astype(f32).reshape(N))
    lmask = jnp.zeros((n_pad, l_pad), f32).at[:N, :L].set(
        (lps != 0).astype(f32))
    rmask = jnp.zeros((n_pad, l_pad), f32).at[:N, :L].set(
        (rps != 0).astype(f32))
    # Per-leaf constant = sum of log of nonzero path weights.  The module
    # builds strictly 0/1 matrices so this is identically 0; kept for
    # generality (nonzero path weights must be positive for the log form).
    log_l = jnp.log(jnp.where(lps != 0, lps, 1.0).astype(f32)).sum(axis=0)
    log_r = jnp.log(jnp.where(rps != 0, rps, 1.0).astype(f32)).sum(axis=0)
    const_row = jnp.zeros((1, l_pad), f32).at[0, :L].set(log_l + log_r)
    ap = jnp.zeros((l_pad, A), f32).at[:L, :].set(action_probs.astype(f32))

    # MXU operand dtype (bf16 recommended on v6e/v7x; f32 default for parity
    # with the f32 reference and for v5e).
    x_in = x.astype(mxu_dtype)
    wt = wt.astype(mxu_dtype)
    lmask = lmask.astype(mxu_dtype)
    rmask = rmask.astype(mxu_dtype)
    ap = ap.astype(mxu_dtype)
    alpha_arr = jnp.asarray(alpha, f32).reshape(1, 1)

    # --- batch tiling --------------------------------------------------------
    tb = _round_up(min(batch_tile, _round_up(B, 8)), 8)
    b_pad = _round_up(B, tb)
    if b_pad != B:
        x_in = jnp.pad(x_in, ((0, b_pad - B), (0, 0)))

    # VMEM budget: double-buffered x/out tiles + grid-resident weights/masks
    # (v5e default scoped limit 16 MiB, v7x physical 64 MiB per TC).
    item = jnp.dtype(mxu_dtype).itemsize
    resident = ((D * n_pad + 2 * n_pad * l_pad + l_pad * A) * item
                + (n_pad + l_pad) * 4)
    per_step = 2 * (tb * D * item + tb * A * 4)
    assert 2 * resident + per_step <= vmem_limit_bytes, \
        "raise vmem_limit_bytes or shrink batch_tile"

    kernel = functools.partial(prolonet_kernel, is_value=is_value)
    out = pl.pallas_call(
        kernel,
        out_shape=jax.ShapeDtypeStruct((b_pad, A), f32),
        grid=(b_pad // tb,),
        in_specs=[
            pl.BlockSpec((tb, D), lambda i: (i, 0)),            # x (batch-tiled)
            pl.BlockSpec((D, n_pad), lambda i: (0, 0)),         # W^T (resident)
            pl.BlockSpec((1, n_pad), lambda i: (0, 0)),         # comparators
            pl.BlockSpec(memory_space=pltpu.MemorySpace.SMEM),  # alpha scalar
            pl.BlockSpec((n_pad, l_pad), lambda i: (0, 0)),     # left path mask
            pl.BlockSpec((n_pad, l_pad), lambda i: (0, 0)),     # right path mask
            pl.BlockSpec((1, l_pad), lambda i: (0, 0)),         # per-leaf log const
            pl.BlockSpec((l_pad, A), lambda i: (0, 0)),         # action probs
        ],
        out_specs=pl.BlockSpec((tb, A), lambda i: (i, 0)),
        compiler_params=pltpu.CompilerParams(
            dimension_semantics=("parallel",),
            vmem_limit_bytes=vmem_limit_bytes),
    )(x_in, wt, c_row, alpha_arr, lmask, rmask, const_row, ap)

    return out if b_pad == B else out[:B]


def reference_forward(x, weights, comparators, alpha, lps, rps, action_probs,
                      is_value=False):
    """Pure-JAX mirror of the PyTorch forward (defined for batch=1), vmapped
    over the batch rows to define the batched semantics."""
    def single(xr):
        comp = jnp.sum(weights * xr[None, :], axis=1)          # (N,)
        comp = (comp - comparators[:, 0]) * alpha
        sig_vals = jax.nn.sigmoid(comp)[None, :]               # (1, N)
        one_minus = 1.0 - sig_vals
        left = (lps.T * sig_vals).T
        right = (rps.T * one_minus).T
        left = left + jnp.where(lps == 0.0, 1.0, 0.0)
        right = right + jnp.where(rps == 0.0, 1.0, 0.0)
        probs = jnp.prod(jnp.concatenate([left, right], axis=0), axis=0)
        actions = (probs[None, :] @ action_probs).reshape(-1)
        return actions if is_value else jax.nn.softmax(actions, axis=-1)
    return jax.vmap(single)(x)


if __name__ == "__main__":
    # Small depth-2 decision tree: 3 internal nodes, 4 leaves, 4 actions.
    input_dim = 8
    n_nodes = 3
    n_leaves = 4
    n_actions = 4
    batch = 512           # 2 grid steps of 256 rows (both v7x TCs get work)
    alpha = 1.5

    key = jax.random.PRNGKey(0)
    k_x, k_w, k_c, k_p = jax.random.split(key, 4)

    x = jax.random.normal(k_x, (batch, input_dim), dtype=jnp.float32)
    weights = jax.random.normal(k_w, (n_nodes, input_dim), dtype=jnp.float32)
    comparators = jax.random.normal(k_c, (n_nodes, 1), dtype=jnp.float32)
    action_probs = jax.random.normal(k_p, (n_leaves, n_actions),
                                     dtype=jnp.float32)

    # leaves = [([left node idxs], [right node idxs], probs), ...]
    leaves = [
        ([0, 1], [],     None),   # left at 0, left at 1
        ([0],    [1],    None),   # left at 0, right at 1
        ([2],    [0],    None),   # right at 0, left at 2
        ([],     [0, 2], None),   # right at 0, right at 2
    ]
    lps = jnp.zeros((n_nodes, n_leaves), dtype=jnp.float32)
    rps = jnp.zeros((n_nodes, n_leaves), dtype=jnp.float32)
    for l, (left_idx, right_idx, _) in enumerate(leaves):
        for i in left_idx:
            lps = lps.at[i, l].set(1.0)
        for j in right_idx:
            rps = rps.at[j, l].set(1.0)

    # Policy head (softmax).
    out = prolonet_forward(x, weights, comparators, alpha, lps, rps,
                           action_probs, batch_tile=256)
    out = jax.block_until_ready(out)
    ref = reference_forward(x, weights, comparators, alpha, lps, rps,
                            action_probs)
    assert out.shape == (batch, n_actions)
    assert jnp.allclose(out, ref, atol=1e-3, rtol=1e-3)

    # Value head (is_value=True -> raw leaf-weighted logits, no softmax).
    val = prolonet_forward(x, weights, comparators, alpha, lps, rps,
                           action_probs, batch_tile=256, is_value=True)
    val = jax.block_until_ready(val)
    ref_val = reference_forward(x, weights, comparators, alpha, lps, rps,
                                action_probs, is_value=True)
    assert jnp.allclose(val, ref_val, atol=1e-3, rtol=1e-3)

    print("KERNEL_OK")
</pallas_src>

<mosaic_0001>
module attributes {stable_mosaic.version = 11 : i64} {
  func.func @prolonet_kernel(%arg0: i32, %arg1: memref<256x8xf32, #tpu.memory_space<vmem>>, %arg2: memref<8x128xf32, #tpu.memory_space<vmem>>, %arg3: memref<1x128xf32, #tpu.memory_space<vmem>>, %arg4: memref<1x1xf32, #tpu.memory_space<smem>>, %arg5: memref<128x128xf32, #tpu.memory_space<vmem>>, %arg6: memref<128x128xf32, #tpu.memory_space<vmem>>, %arg7: memref<1x128xf32, #tpu.memory_space<vmem>>, %arg8: memref<128x4xf32, #tpu.memory_space<vmem>>, %arg9: memref<256x4xf32, #tpu.memory_space<vmem>>) attributes {dimension_semantics = [#tpu.dimension_semantics<parallel>], iteration_bounds = array<i64: 2>, scalar_prefetch = 0 : i64, scratch_operands = 0 : i64, tpu.core_type = #tpu.core_type<tc>, window_params = [{transform_indices = @transform_0, window_bounds = array<i64: 256, 8>}, {pipeline_mode = #tpu.pipeline_mode<synchronous>, transform_indices = @transform_1, window_bounds = array<i64: 8, 128>}, {pipeline_mode = #tpu.pipeline_mode<synchronous>, transform_indices = @transform_2, window_bounds = array<i64: 1, 128>}, {transform_indices = @transform_3, window_bounds = array<i64: 1, 1>}, {pipeline_mode = #tpu.pipeline_mode<synchronous>, transform_indices = @transform_4, window_bounds = array<i64: 128, 128>}, {pipeline_mode = #tpu.pipeline_mode<synchronous>, transform_indices = @transform_5, window_bounds = array<i64: 128, 128>}, {pipeline_mode = #tpu.pipeline_mode<synchronous>, transform_indices = @transform_6, window_bounds = array<i64: 1, 128>}, {pipeline_mode = #tpu.pipeline_mode<synchronous>, transform_indices = @transform_7, window_bounds = array<i64: 128, 4>}, {transform_indices = @transform_8, window_bounds = array<i64: 256, 4>}]} {
    %c0 = arith.constant 0 : index
    %c0_0 = arith.constant 0 : index
    %0 = memref.load %arg4[%c0, %c0_0] : memref<1x1xf32, #tpu.memory_space<smem>>
    %c0_1 = arith.constant 0 : index
    %c0_2 = arith.constant 0 : index
    %1 = vector.load %arg1[%c0_1, %c0_2] : memref<256x8xf32, #tpu.memory_space<vmem>>, vector<256x8xf32>
    %c0_3 = arith.constant 0 : index
    %c0_4 = arith.constant 0 : index
    %2 = vector.load %arg2[%c0_3, %c0_4] : memref<8x128xf32, #tpu.memory_space<vmem>>, vector<8x128xf32>
    %cst = arith.constant dense<0.000000e+00> : vector<256x128xf32>
    %3 = tpu.matmul %1, %2, %cst {dimension_numbers = #tpu.dot_dimension_numbers<[1], [0], [0], [1], [0, 0, 1, 1], [], []>} : vector<256x8xf32>, vector<8x128xf32>, vector<256x128xf32> -> vector<256x128xf32>
    %c0_5 = arith.constant 0 : index
    %c0_6 = arith.constant 0 : index
    %4 = vector.load %arg3[%c0_5, %c0_6] : memref<1x128xf32, #tpu.memory_space<vmem>>, vector<1x128xf32>
    %5 = vector.broadcast %4 : vector<1x128xf32> to vector<256x128xf32>
    %6 = arith.subf %3, %5 : vector<256x128xf32>
    %7 = vector.broadcast %0 : f32 to vector<256x128xf32>
    %8 = arith.mulf %6, %7 : vector<256x128xf32>
    %9 = math.absf %8 : vector<256x128xf32>
    %cst_7 = arith.constant 0.000000e+00 : f32
    %10 = vector.broadcast %cst_7 : f32 to vector<256x128xf32>
    %11 = arith.subf %10, %9 : vector<256x128xf32>
    %12 = math.exp %11 : vector<256x128xf32>
    %cst_8 = arith.constant 1.000000e+00 : f32
    %13 = vector.broadcast %cst_8 : f32 to vector<256x128xf32>
    %14 = arith.addf %13, %12 : vector<256x128xf32>
    %15 = math.log %14 : vector<256x128xf32>
    %cst_9 = arith.constant 0.000000e+00 : f32
    %16 = vector.broadcast %cst_9 : f32 to vector<256x128xf32>
    %17 = arith.minimumf %8, %16 : vector<256x128xf32>
    %18 = arith.subf %17, %15 : vector<256x128xf32>
    %cst_10 = arith.constant 0.000000e+00 : f32
    %19 = vector.broadcast %cst_10 : f32 to vector<256x128xf32>
    %20 = arith.subf %19, %8 : vector<256x128xf32>
    %cst_11 = arith.constant 0.000000e+00 : f32
    %21 = vector.broadcast %cst_11 : f32 to vector<256x128xf32>
    %22 = arith.minimumf %20, %21 : vector<256x128xf32>
    %23 = arith.subf %22, %15 : vector<256x128xf32>
    %c0_12 = arith.constant 0 : index
    %c0_13 = arith.constant 0 : index
    %24 = vector.load %arg5[%c0_12, %c0_13] : memref<128x128xf32, #tpu.memory_space<vmem>>, vector<128x128xf32>
    %cst_14 = arith.constant dense<0.000000e+00> : vector<256x128xf32>
    %25 = tpu.matmul %18, %24, %cst_14 {dimension_numbers = #tpu.dot_dimension_numbers<[1], [0], [0], [1], [0, 0, 1, 1], [], []>} : vector<256x128xf32>, vector<128x128xf32>, vector<256x128xf32> -> vector<256x128xf32>
    %c0_15 = arith.constant 0 : index
    %c0_16 = arith.constant 0 : index
    %26 = vector.load %arg6[%c0_15, %c0_16] : memref<128x128xf32, #tpu.memory_space<vmem>>, vector<128x128xf32>
    %cst_17 = arith.constant dense<0.000000e+00> : vector<256x128xf32>
    %27 = tpu.matmul %23, %26, %cst_17 {dimension_numbers = #tpu.dot_dimension_numbers<[1], [0], [0], [1], [0, 0, 1, 1], [], []>} : vector<256x128xf32>, vector<128x128xf32>, vector<256x128xf32> -> vector<256x128xf32>
    %28 = arith.addf %25, %27 : vector<256x128xf32>
    %c0_18 = arith.constant 0 : index
    %c0_19 = arith.constant 0 : index
    %29 = vector.load %arg7[%c0_18, %c0_19] : memref<1x128xf32, #tpu.memory_space<vmem>>, vector<1x128xf32>
    %30 = vector.broadcast %29 : vector<1x128xf32> to vector<256x128xf32>
    %31 = arith.addf %28, %30 : vector<256x128xf32>
    %32 = math.exp %31 : vector<256x128xf32>
    %c0_20 = arith.constant 0 : index
    %c0_21 = arith.constant 0 : index
    %33 = vector.load %arg8[%c0_20, %c0_21] : memref<128x4xf32, #tpu.memory_space<vmem>>, vector<128x4xf32>
    %cst_22 = arith.constant dense<0.000000e+00> : vector<256x4xf32>
    %34 = tpu.matmul %32, %33, %cst_22 {dimension_numbers = #tpu.dot_dimension_numbers<[1], [0], [0], [1], [0, 0, 1, 1], [], []>} : vector<256x128xf32>, vector<128x4xf32>, vector<256x4xf32> -> vector<256x4xf32>
    %cst_23 = arith.constant dense<0xFF800000> : vector<256xf32>
    %35 = vector.multi_reduction <maximumf>, %34, %cst_23 [1] : vector<256x4xf32> to vector<256xf32>
    %36 = vector.shape_cast %35 : vector<256xf32> to vector<256x1xf32>
    %37 = vector.broadcast %36 : vector<256x1xf32> to vector<256x4xf32>
    %38 = arith.subf %34, %37 : vector<256x4xf32>
    %39 = math.exp %38 : vector<256x4xf32>
    %cst_24 = arith.constant dense<0.000000e+00> : vector<256xf32>
    %40 = vector.multi_reduction <add>, %39, %cst_24 [1] : vector<256x4xf32> to vector<256xf32>
    %41 = vector.shape_cast %40 : vector<256xf32> to vector<256x1xf32>
    %42 = vector.broadcast %41 : vector<256x1xf32> to vector<256x4xf32>
    %43 = arith.divf %39, %42 : vector<256x4xf32>
    %c0_25 = arith.constant 0 : index
    %c0_26 = arith.constant 0 : index
    %44 = vector.load %arg9[%c0_25, %c0_26] : memref<256x4xf32, #tpu.memory_space<vmem>>, vector<256x4xf32>
    tpu.vector_store %arg9[%c0_25, %c0_26], %43 {strides = array<i32>} : memref<256x4xf32, #tpu.memory_space<vmem>>, vector<256x4xf32>,
    return
  }
  func.func @transform_0(%arg0: i32) -> (i32, i32) {
    %c0_i32 = arith.constant 0 : i32
    %c0_i32_0 = arith.constant 0 : i32
    return %arg0, %c0_i32 : i32, i32
  }
  func.func @transform_1(%arg0: i32) -> (i32, i32) {
    %c0_i32 = arith.constant 0 : i32
    %c0_i32_0 = arith.constant 0 : i32
    %c0_i32_1 = arith.constant 0 : i32
    return %c0_i32, %c0_i32_0 : i32, i32
  }
  func.func @transform_2(%arg0: i32) -> (i32, i32) {
    %c0_i32 = arith.constant 0 : i32
    %c0_i32_0 = arith.constant 0 : i32
    %c0_i32_1 = arith.constant 0 : i32
    return %c0_i32, %c0_i32_0 : i32, i32
  }
  func.func @transform_3(%arg0: i32) -> (i32, i32) {
    %c0_i32 = arith.constant 0 : i32
    %c0_i32_0 = arith.constant 0 : i32
    %c0_i32_1 = arith.constant 0 : i32
    return %c0_i32, %c0_i32_0 : i32, i32
  }
  func.func @transform_4(%arg0: i32) -> (i32, i32) {
    %c0_i32 = arith.constant 0 : i32
    %c0_i32_0 = arith.constant 0 : i32
    %c0_i32_1 = arith.constant 0 : i32
    return %c0_i32, %c0_i32_0 : i32, i32
  }
  func.func @transform_5(%arg0: i32) -> (i32, i32) {
    %c0_i32 = arith.constant 0 : i32
    %c0_i32_0 = arith.constant 0 : i32
    %c0_i32_1 = arith.constant 0 : i32
    return %c0_i32, %c0_i32_0 : i32, i32
  }
  func.func @transform_6(%arg0: i32) -> (i32, i32) {
    %c0_i32 = arith.constant 0 : i32
    %c0_i32_0 = arith.constant 0 : i32
    %c0_i32_1 = arith.constant 0 : i32
    return %c0_i32, %c0_i32_0 : i32, i32
  }
  func.func @transform_7(%arg0: i32) -> (i32, i32) {
    %c0_i32 = arith.constant 0 : i32
    %c0_i32_0 = arith.constant 0 : i32
    %c0_i32_1 = arith.constant 0 : i32
    return %c0_i32, %c0_i32_0 : i32, i32
  }
  func.func @transform_8(%arg0: i32) -> (i32, i32) {
    %c0_i32 = arith.constant 0 : i32
    %c0_i32_0 = arith.constant 0 : i32
    return %arg0, %c0_i32 : i32, i32
  }
}

</mosaic_0001>

<llo_original>
// kernel: tpu_custom_call.1
$region0: #{tpu_custom_call.1}
  #allocation0 [shape = 'u32[]', space=smem, size = 0x4, offset = 0x4, fixed_abs, tag = 'smem constant byte address 0x4 - core index']
  #allocation1 [shape = 'u32[144,128]{1,0:T(1,128)}', space=vmem, size = 0x12000, scoped, tag = 'internal scratch']
  #allocation2 [shape = 'f32[1,1]{1,0:T(1,128)S(6)}', space=smem, size = 0x200, scoped, tag = 'scoped memory for tpu_custom_call.1']
  %s0 = inlined_call_operand.vmem [shape: f32[512,8], index: 0, kind: input, shape index: {}]
  %s1 = inlined_call_operand.vmem [shape: f32[8,128], index: 1, kind: input, shape index: {}]
  %s2 = inlined_call_operand.vmem [shape: f32[1,128], index: 2, kind: input, shape index: {}]
  %s3 = inlined_call_operand.<no memory space> [shape: f32[1,1], index: 3, kind: input, shape index: {}]
  %s4 = inlined_call_operand.vmem [shape: f32[128,128], index: 4, kind: input, shape index: {}]
  %s5 = inlined_call_operand.vmem [shape: f32[128,128], index: 5, kind: input, shape index: {}]
  %s6 = inlined_call_operand.vmem [shape: f32[1,128], index: 6, kind: input, shape index: {}]
  %s7 = inlined_call_operand.vmem [shape: f32[128,4], index: 7, kind: input, shape index: {}]
  %s8 = inlined_call_operand.vmem [shape: f32[512,4], index: 8, kind: output, shape index: {}]
  %s9 = sld [smem:[#allocation0]]
  $region65: #{tpu_custom_call.1} parent=0
    _
  %s11 = ssub.s32 1, %s9
  %s12 = scalar_select 0, %s11, %s9
  %13 = sst [smem:[#allocation2]] %s3
  loop: start=0, step=1, limit=4
  $region2: #{tpu_custom_call.1} parent=0 // loop_pre_header
    _
  $region3: #{tpu_custom_call.1} parent=0 // loop_header
    %s15 = sphi 0, %s19
    %p16 = scmp.ge.s32.totalorder %s15, 4
    %s25 = sphi 0, %s27
    %s28 = sphi 0, %s25
    %s29 = sphi 0, %s28
    %s45 = sphi 0, %s29
    %s49 = sphi 0, %s49
    %s51 = sphi 0, %s49
    %s52 = sphi 0, %s51
    %s66 = sphi 0, %s52
    %s70 = sphi 0, %s70
    %s72 = sphi 0, %s70
    %s73 = sphi 0, %s72
    %s87 = sphi 0, %s73
    %s91 = sphi 0, %s91
    %s93 = sphi 0, %s91
    %s94 = sphi 0, %s93
    %s108 = sphi 0, %s94
    %s112 = sphi 0, %s112
    %s114 = sphi 0, %s112
    %s115 = sphi 0, %s114
    %s129 = sphi 0, %s115
    %s133 = sphi 0, %s133
    %s135 = sphi 0, %s133
    %s136 = sphi 0, %s135
    %s150 = sphi 0, %s136
    %s154 = sphi 0, %s154
    %s156 = sphi 0, %s154
    %s157 = sphi 0, %s156
    %s171 = sphi 0, %s157
    %s175 = sphi 0, %s175
    %s177 = sphi 0, %s175
    %s178 = sphi 0, %s177
    %s192 = sphi 0, %s178
    %s198 = sphi 0, %s200
    %s201 = sphi 0, %s198
    %s202 = sphi 0, %s201
    %s218 = sphi 0, %s202
  $region4: #{tpu_custom_call.1} parent=0 // loop_header_branch
    %18 = sbr.rel (%p16) target = $region8
  $region5: #{tpu_custom_call.1} parent=0 // loop_body
    %s20 = ssub.s32 %s15, 1
    %s21 = ssub.s32 %s15, 2
    %s22 = sadd.s32 %s15, 1
    %s23 = ssub.s32 %s15, %s22
    %p24 = scmp.eq.s32.totalorder %s23, 0
    %s26 = sadd.s32 %s25, 1
    %s27 = scalar_select %p24, %s25, %s26
    %p30 = pneg %p24
    %p31 = scmp.eq.s32.totalorder %s15, 1
    %p32 = por %p30, %p31
    %p33 = scmp.ne.s32.totalorder %s25, %s28
    %p34 = scmp.eq.s32.totalorder %s15, 0
    %p35 = por %p33, %p34
    %p36 = scmp.ne.s32.totalorder %s25, %s28
    %p37 = scmp.eq.s32.totalorder %s20, 1
    %p38 = por %p36, %p37
    %p39 = scmp.ne.s32.totalorder %s28, %s29
    %p40 = scmp.eq.s32.totalorder %s20, 0
    %p41 = por %p39, %p40
    %p42 = scmp.ne.s32.totalorder %s28, %s29
    %p43 = scmp.eq.s32.totalorder %s21, 1
    %p44 = por %p42, %p43
    %p46 = scmp.ne.s32.totalorder %s29, %s45
    %p47 = scmp.eq.s32.totalorder %s21, 0
    %p48 = por %p46, %p47
    %s50 = sadd.s32 %s49, 1
    %p53 = scmp.eq.s32.totalorder %s15, 1
    %p54 = scmp.ne.s32.totalorder %s49, %s51
    %p55 = scmp.eq.s32.totalorder %s15, 0
    %p56 = por %p54, %p55
    %p57 = scmp.ne.s32.totalorder %s49, %s51
    %p58 = scmp.eq.s32.totalorder %s20, 1
    %p59 = por %p57, %p58
    %p60 = scmp.ne.s32.totalorder %s51, %s52
    %p61 = scmp.eq.s32.totalorder %s20, 0
    %p62 = por %p60, %p61
    %p63 = scmp.ne.s32.totalorder %s51, %s52
    %p64 = scmp.eq.s32.totalorder %s21, 1
    %p65 = por %p63, %p64
    %p67 = scmp.ne.s32.totalorder %s52, %s66
    %p68 = scmp.eq.s32.totalorder %s21, 0
    %p69 = por %p67, %p68
    %s71 = sadd.s32 %s70, 1
    %p74 = scmp.eq.s32.totalorder %s15, 1
    %p75 = scmp.ne.s32.totalorder %s70, %s72
    %p76 = scmp.eq.s32.totalorder %s15, 0
    %p77 = por %p75, %p76
    %p78 = scmp.ne.s32.totalorder %s70, %s72
    %p79 = scmp.eq.s32.totalorder %s20, 1
    %p80 = por %p78, %p79
    %p81 = scmp.ne.s32.totalorder %s72, %s73
    %p82 = scmp.eq.s32.totalorder %s20, 0
    %p83 = por %p81, %p82
    %p84 = scmp.ne.s32.totalorder %s72, %s73
    %p85 = scmp.eq.s32.totalorder %s21, 1
    %p86 = por %p84, %p85
    %p88 = scmp.ne.s32.totalorder %s73, %s87
    %p89 = scmp.eq.s32.totalorder %s21, 0
    %p90 = por %p88, %p89
    %s92 = sadd.s32 %s91, 1
    %p95 = scmp.eq.s32.totalorder %s15, 1
    %p96 = scmp.ne.s32.totalorder %s91, %s93
    %p97 = scmp.eq.s32.totalorder %s15, 0
    %p98 = por %p96, %p97
    %p99 = scmp.ne.s32.totalorder %s91, %s93
    %p100 = scmp.eq.s32.totalorder %s20, 1
    %p101 = por %p99, %p100
    %p102 = scmp.ne.s32.totalorder %s93, %s94
    %p103 = scmp.eq.s32.totalorder %s20, 0
    %p104 = por %p102, %p103
    %p105 = scmp.ne.s32.totalorder %s93, %s94
    %p106 = scmp.eq.s32.totalorder %s21, 1
    %p107 = por %p105, %p106
    %p109 = scmp.ne.s32.totalorder %s94, %s108
    %p110 = scmp.eq.s32.totalorder %s21, 0
    %p111 = por %p109, %p110
    %s113 = sadd.s32 %s112, 1
    %p116 = scmp.eq.s32.totalorder %s15, 1
    %p117 = scmp.ne.s32.totalorder %s112, %s114
    %p118 = scmp.eq.s32.totalorder %s15, 0
    %p119 = por %p117, %p118
    %p120 = scmp.ne.s32.totalorder %s112, %s114
    %p121 = scmp.eq.s32.totalorder %s20, 1
    %p122 = por %p120, %p121
    %p123 = scmp.ne.s32.totalorder %s114, %s115
    %p124 = scmp.eq.s32.totalorder %s20, 0
    %p125 = por %p123, %p124
    %p126 = scmp.ne.s32.totalorder %s114, %s115
    %p127 = scmp.eq.s32.totalorder %s21, 1
    %p128 = por %p126, %p127
    %p130 = scmp.ne.s32.totalorder %s115, %s129
    %p131 = scmp.eq.s32.totalorder %s21, 0
    %p132 = por %p130, %p131
    %s134 = sadd.s32 %s133, 1
    %p137 = scmp.eq.s32.totalorder %s15, 1
    %p138 = scmp.ne.s32.totalorder %s133, %s135
    %p139 = scmp.eq.s32.totalorder %s15, 0
    %p140 = por %p138, %p139
    %p141 = scmp.ne.s32.totalorder %s133, %s135
    %p142 = scmp.eq.s32.totalorder %s20, 1
    %p143 = por %p141, %p142
    %p144 = scmp.ne.s32.totalorder %s135, %s136
    %p145 = scmp.eq.s32.totalorder %s20, 0
    %p146 = por %p144, %p145
    %p147 = scmp.ne.s32.totalorder %s135, %s136
    %p148 = scmp.eq.s32.totalorder %s21, 1
    %p149 = por %p147, %p148
    %p151 = scmp.ne.s32.totalorder %s136, %s150
    %p152 = scmp.eq.s32.totalorder %s21, 0
    %p153 = por %p151, %p152
    %s155 = sadd.s32 %s154, 1
    %p158 = scmp.eq.s32.totalorder %s15, 1
    %p159 = scmp.ne.s32.totalorder %s154, %s156
    %p160 = scmp.eq.s32.totalorder %s15, 0
    %p161 = por %p159, %p160
    %p162 = scmp.ne.s32.totalorder %s154, %s156
    %p163 = scmp.eq.s32.totalorder %s20, 1
    %p164 = por %p162, %p163
    %p165 = scmp.ne.s32.totalorder %s156, %s157
    %p166 = scmp.eq.s32.totalorder %s20, 0
    %p167 = por %p165, %p166
    %p168 = scmp.ne.s32.totalorder %s156, %s157
    %p169 = scmp.eq.s32.totalorder %s21, 1
    %p170 = por %p168, %p169
    %p172 = scmp.ne.s32.totalorder %s157, %s171
    %p173 = scmp.eq.s32.totalorder %s21, 0
    %p174 = por %p172, %p173
    %s176 = sadd.s32 %s175, 1
    %p179 = scmp.eq.s32.totalorder %s15, 1
    %p180 = scmp.ne.s32.totalorder %s175, %s177
    %p181 = scmp.eq.s32.totalorder %s15, 0
    %p182 = por %p180, %p181
    %p183 = scmp.ne.s32.totalorder %s175, %s177
    %p184 = scmp.eq.s32.totalorder %s20, 1
    %p185 = por %p183, %p184
    %p186 = scmp.ne.s32.totalorder %s177, %s178
    %p187 = scmp.eq.s32.totalorder %s20, 0
    %p188 = por %p186, %p187
    %p189 = scmp.ne.s32.totalorder %s177, %s178
    %p190 = scmp.eq.s32.totalorder %s21, 1
    %p191 = por %p189, %p190
    %p193 = scmp.ne.s32.totalorder %s178, %s192
    %p194 = scmp.eq.s32.totalorder %s21, 0
    %p195 = por %p193, %p194
    %s196 = ssub.s32 %s15, %s22
    %p197 = scmp.eq.s32.totalorder %s196, 0
    %s199 = sadd.s32 %s198, 1
    %s200 = scalar_select %p197, %s198, %s199
    %p203 = pneg %p197
    %p204 = scmp.eq.s32.totalorder %s15, 1
    %p205 = por %p203, %p204
    %p206 = scmp.ne.s32.totalorder %s198, %s201
    %p207 = scmp.eq.s32.totalorder %s15, 0
    %p208 = por %p206, %p207
    %p209 = scmp.ne.s32.totalorder %s198, %s201
    %p210 = scmp.eq.s32.totalorder %s20, 1
    %p211 = por %p209, %p210
    %p212 = scmp.ne.s32.totalorder %s201, %s202
    %p213 = scmp.eq.s32.totalorder %s20, 0
    %p214 = por %p212, %p213
    %p215 = scmp.ne.s32.totalorder %s201, %s202
    %p216 = scmp.eq.s32.totalorder %s21, 1
    %p217 = por %p215, %p216
    %p219 = scmp.ne.s32.totalorder %s202, %s218
    %p220 = scmp.eq.s32.totalorder %s21, 0
    %p221 = por %p219, %p220
    %p222 = scmp.le.s32.totalorder 1, %s15
    %p223 = scmp.lt.s32.totalorder %s15, 3
    %p224 = pnand %p222, %p223
    %p225 = pneg %p224
    // Predicated region
    $region9: #{tpu_custom_call.1} parent=5 // pred_check
      _
    $region10: #{tpu_custom_call.1} parent=5 // pred_check_branch
      %227 = sbr.rel (%p224) target = $region12
    $region11: #{tpu_custom_call.1} parent=5 // pred_region
      %s228 = ssub.s32 %s15, 1
      // Predicated region
      $region13: #{tpu_custom_call.1} parent=11 // pred_check
        %p229 = pneg %p62
      $region14: #{tpu_custom_call.1} parent=11 // pred_check_branch
        %231 = sbr.rel (%p229) target = $region16
      $region15: #{tpu_custom_call.1} parent=11 // pred_region
        _
      $region16: #{tpu_custom_call.1} parent=11 // pred_fallthru
        _
      // Predicated region
      $region17: #{tpu_custom_call.1} parent=11 // pred_check
        %p232 = pneg %p83
      $region18: #{tpu_custom_call.1} parent=11 // pred_check_branch
        %234 = sbr.rel (%p232) target = $region20
      $region19: #{tpu_custom_call.1} parent=11 // pred_region
        _
      $region20: #{tpu_custom_call.1} parent=11 // pred_fallthru
        _
      // Predicated region
      $region21: #{tpu_custom_call.1} parent=11 // pred_check
        %p235 = pneg %p104
      $region22: #{tpu_custom_call.1} parent=11 // pred_check_branch
        %237 = sbr.rel (%p235) target = $region24
      $region23: #{tpu_custom_call.1} parent=11 // pred_region
        _
      $region24: #{tpu_custom_call.1} parent=11 // pred_fallthru
        _
      // Predicated region
      $region25: #{tpu_custom_call.1} parent=11 // pred_check
        %p238 = pneg %p125
      $region26: #{tpu_custom_call.1} parent=11 // pred_check_branch
        %240 = sbr.rel (%p238) target = $region28
      $region27: #{tpu_custom_call.1} parent=11 // pred_region
        _
      $region28: #{tpu_custom_call.1} parent=11 // pred_fallthru
        _
      // Predicated region
      $region29: #{tpu_custom_call.1} parent=11 // pred_check
        %p241 = pneg %p146
      $region30: #{tpu_custom_call.1} parent=11 // pred_check_branch
        %243 = sbr.rel (%p241) target = $region32
      $region31: #{tpu_custom_call.1} parent=11 // pred_region
        _
      $region32: #{tpu_custom_call.1} parent=11 // pred_fallthru
        _
      // Predicated region
      $region33: #{tpu_custom_call.1} parent=11 // pred_check
        %p244 = pneg %p167
      $region34: #{tpu_custom_call.1} parent=11 // pred_check_branch
        %246 = sbr.rel (%p244) target = $region36
      $region35: #{tpu_custom_call.1} parent=11 // pred_region
        _
      $region36: #{tpu_custom_call.1} parent=11 // pred_fallthru
        _
      // Predicated region
      $region37: #{tpu_custom_call.1} parent=11 // pred_check
        %p247 = pneg %p188
      $region38: #{tpu_custom_call.1} parent=11 // pred_check_branch
        %249 = sbr.rel (%p247) target = $region40
      $region39: #{tpu_custom_call.1} parent=11 // pred_region
        _
      $region40: #{tpu_custom_call.1} parent=11 // pred_fallthru
        _
    $region12: #{tpu_custom_call.1} parent=5 // pred_fallthru
      _
    %p250 = scmp.lt.s32.totalorder %s15, 2
    // Predicated region
    $region41: #{tpu_custom_call.1} parent=5 // pred_check
      %p251 = pneg %p250
    $region42: #{tpu_custom_call.1} parent=5 // pred_check_branch
      %253 = sbr.rel (%p251) target = $region44
    $region43: #{tpu_custom_call.1} parent=5 // pred_region
      // Predicated region
      $region45: #{tpu_custom_call.1} parent=43 // pred_check
        %p254 = pneg %p35
      $region46: #{tpu_custom_call.1} parent=43 // pred_check_branch
        %256 = sbr.rel (%p254) target = $region48
      $region47: #{tpu_custom_call.1} parent=43 // pred_region
        %s257 = smul.u32 32, %s15
        %p258 = scmp.lt.s32.totalorder %s257, 63
        %s259 = scalar_select %p258, %s257, 63
        %s260 = smul.addr %s259, 8
        %s261 = scalar_lea.vmem %s0, %s260
        %s262 = smul.u32 32, %s15
      $region48: #{tpu_custom_call.1} parent=43 // pred_fallthru
        _
    $region44: #{tpu_custom_call.1} parent=5 // pred_fallthru
      _
    %p263 = scmp.le.s32.totalorder 1, %s15
    %p264 = scmp.lt.s32.totalorder %s15, 3
    %p265 = pnand %p263, %p264
    %p266 = pneg %p265
    // Predicated region
    $region49: #{tpu_custom_call.1} parent=5 // pred_check
      _
    $region50: #{tpu_custom_call.1} parent=5 // pred_check_branch
      %268 = sbr.rel (%p265) target = $region52
    $region51: #{tpu_custom_call.1} parent=5 // pred_region
      %s269 = ssub.s32 %s15, 1
      %s270 = smul.u32 32, %s20
      %p271 = scmp.lt.s32.totalorder %s270, 63
      %s272 = scalar_select %p271, %s270, 63
      %s273 = smul.addr %s272, 8
      %s274 = scalar_lea.vmem %s0, %s273
      %p275 = pneg %p41
      %p276 = pneg %p38
      %p277 = pneg %p62
      %p278 = pneg %p59
      %p279 = pneg %p83
      %p280 = pneg %p80
      %p281 = pneg %p104
      %p282 = pneg %p101
      %p283 = pneg %p125
      %p284 = pneg %p122
      %p285 = pneg %p146
      %p286 = pneg %p143
      %p287 = pneg %p167
      %p288 = pneg %p164
      %p289 = pneg %p188
      %p290 = pneg %p185
      %p291 = pneg %p214
      %p292 = pneg %p211
      %s293 = smul.u32 32, %s20
      %p294 = scmp.lt.s32.totalorder %s293, 63
      %s295 = scalar_select %p294, %s293, 63
      %s296 = smul.addr %s295, 8
      %s297 = scalar_lea.vmem %s8, %s296
      %s298 = smul.u32 32, %s20
      %p299 = scmp.lt.s32.totalorder %s298, 63
      %s300 = scalar_select %p299, %s298, 63
      %s301 = smul.addr %s300, 8
      %s302 = scalar_lea.vmem %s0, %s301
      %s303 = smul.u32 32, %s20
      %s304 = smul.u32 32, %s20
      %p305 = scmp.lt.s32.totalorder %s304, 63
      %s306 = scalar_select %p305, %s304, 63
      %s307 = smul.addr %s306, 8
      %s308 = scalar_lea.vmem %s8, %s307
      %s309 = smul.u32 32, %s20
      %s310 = sld [smem:[#allocation2]]
      %v311 = vld [vmem:[%s302] sm:$0xff]
      %v312 = vld [vmem:[%s302 + $0x8] sm:$0xff]
      %v313 = vld [vmem:[%s302 + $0x10] sm:$0xff]
      %v314 = vld [vmem:[%s302 + $0x18] sm:$0xff]
      %v315 = vld [vmem:[%s302 + $0x20] sm:$0xff]
      %v316 = vld [vmem:[%s302 + $0x28] sm:$0xff]
      %v317 = vld [vmem:[%s302 + $0x30] sm:$0xff]
      %v318 = vld [vmem:[%s302 + $0x38] sm:$0xff]
      %v319 = vld [vmem:[%s302 + $0x40] sm:$0xff]
      %v320 = vld [vmem:[%s302 + $0x48] sm:$0xff]
      %v321 = vld [vmem:[%s302 + $0x50] sm:$0xff]
      %v322 = vld [vmem:[%s302 + $0x58] sm:$0xff]
      %v323 = vld [vmem:[%s302 + $0x60] sm:$0xff]
      %v324 = vld [vmem:[%s302 + $0x68] sm:$0xff]
      %v325 = vld [vmem:[%s302 + $0x70] sm:$0xff]
      %v326 = vld [vmem:[%s302 + $0x78] sm:$0xff]
      %v327 = vld [vmem:[%s302 + $0x80] sm:$0xff]
      %v328 = vld [vmem:[%s302 + $0x88] sm:$0xff]
      %v329 = vld [vmem:[%s302 + $0x90] sm:$0xff]
      %v330 = vld [vmem:[%s302 + $0x98] sm:$0xff]
      %v331 = vld [vmem:[%s302 + $0xa0] sm:$0xff]
      %v332 = vld [vmem:[%s302 + $0xa8] sm:$0xff]
      %v333 = vld [vmem:[%s302 + $0xb0] sm:$0xff]
      %v334 = vld [vmem:[%s302 + $0xb8] sm:$0xff]
      %v335 = vld [vmem:[%s302 + $0xc0] sm:$0xff]
      %v336 = vld [vmem:[%s302 + $0xc8] sm:$0xff]
      %v337 = vld [vmem:[%s302 + $0xd0] sm:$0xff]
      %v338 = vld [vmem:[%s302 + $0xd8] sm:$0xff]
      %v339 = vld [vmem:[%s302 + $0xe0] sm:$0xff]
      %v340 = vld [vmem:[%s302 + $0xe8] sm:$0xff]
      %v341 = vld [vmem:[%s302 + $0xf0] sm:$0xff]
      %v342 = vld [vmem:[%s302 + $0xf8] sm:$0xff]
      %v343 = vld [vmem:[%s1] sm:$0xff]
      %vm344 = vcmask 64512
      %v346 = vsel %vm344, %v311, 0
      %v349 = vsel %vm344, %v312, 0
      %v352 = vsel %vm344, %v313, 0
      %v355 = vsel %vm344, %v314, 0
      %v358 = vsel %vm344, %v315, 0
      %v361 = vsel %vm344, %v316, 0
      %v364 = vsel %vm344, %v317, 0
      %v367 = vsel %vm344, %v318, 0
      %v370 = vsel %vm344, %v319, 0
      %v373 = vsel %vm344, %v320, 0
      %v376 = vsel %vm344, %v321, 0
      %v379 = vsel %vm344, %v322, 0
      %v382 = vsel %vm344, %v323, 0
      %v385 = vsel %vm344, %v324, 0
      %v388 = vsel %vm344, %v325, 0
      %v391 = vsel %vm344, %v326, 0
      %v394 = vsel %vm344, %v327, 0
      %v397 = vsel %vm344, %v328, 0
      %v400 = vsel %vm344, %v329, 0
      %v403 = vsel %vm344, %v330, 0
      %v406 = vsel %vm344, %v331, 0
      %v409 = vsel %vm344, %v332, 0
      %v412 = vsel %vm344, %v333, 0
      %v415 = vsel %vm344, %v334, 0
      %v418 = vsel %vm344, %v335, 0
      %v421 = vsel %vm344, %v336, 0
      %v424 = vsel %vm344, %v337, 0
      %v427 = vsel %vm344, %v338, 0
      %v430 = vsel %vm344, %v339, 0
      %v433 = vsel %vm344, %v340, 0
      %v436 = vsel %vm344, %v341, 0
      %v439 = vsel %vm344, %v342, 0
      %441 = vmatprep.subr.mxu0 0.0
      %442 = vmatpush1.msra.mxu0 %v343
      %443 = vmatprep.subr.mxu0 0.0
      %444 = vmatpush1.msra.mxu0 0.0
      %445 = vmatprep.subr.mxu0 0.0
      %446 = vmatpush1.msra.mxu0 0.0
      %447 = vmatprep.subr.mxu0 0.0
      %448 = vmatpush1.msra.mxu0 0.0
      %449 = vmatprep.subr.mxu0 0.0
      %450 = vmatpush1.msra.mxu0 0.0
      %451 = vmatprep.subr.mxu0 0.0
      %452 = vmatpush1.msra.mxu0 0.0
      %453 = vmatprep.subr.mxu0 0.0
      %454 = vmatpush1.msra.mxu0 0.0
      %455 = vmatprep.subr.mxu0 0.0
      %456 = vmatpush1.msra.mxu0 0.0
      %457 = vmatprep.subr.mxu0 0.0
      %458 = vmatpush1.msra.mxu0 0.0
      %459 = vmatprep.subr.mxu0 0.0
      %460 = vmatpush1.msra.mxu0 0.0
      %461 = vmatprep.subr.mxu0 0.0
      %462 = vmatpush1.msra.mxu0 0.0
      %463 = vmatprep.subr.mxu0 0.0
      %464 = vmatpush1.msra.mxu0 0.0
      %465 = vmatprep.subr.mxu0 0.0
      %466 = vmatpush1.msra.mxu0 0.0
      %467 = vmatprep.subr.mxu0 0.0
      %468 = vmatpush1.msra.mxu0 0.0
      %469 = vmatprep.subr.mxu0 0.0
      %470 = vmatpush1.msra.mxu0 0.0
      %471 = vmatprep.subr.mxu0 0.0
      %472 = vmatpush1.msra.mxu0 0.0
      %473 = vmatprep.subr.mxu0 0.0
      %474 = vmatpush1.msra.mxu0 0.0
      %475 = vmatprep.subr.mxu0 0.0
      %476 = vmatpush1.msra.mxu0 0.0
      %477 = vmatprep.subr.mxu0 0.0
      %478 = vmatpush1.msra.mxu0 0.0
      %479 = vmatprep.subr.mxu0 0.0
      %480 = vmatpush1.msra.mxu0 0.0
      %481 = vmatprep.subr.mxu0 0.0
      %482 = vmatpush1.msra.mxu0 0.0
      %483 = vmatprep.subr.mxu0 0.0
      %484 = vmatpush1.msra.mxu0 0.0
      %485 = vmatprep.subr.mxu0 0.0
      %486 = vmatpush1.msra.mxu0 0.0
      %487 = vmatprep.subr.mxu0 0.0
      %488 = vmatpush1.msra.mxu0 0.0
      %489 = vmatprep.subr.mxu0 0.0
      %490 = vmatpush1.msra.mxu0 0.0
      %491 = vmatprep.subr.mxu0 0.0
      %492 = vmatpush1.msra.mxu0 0.0
      %493 = vmatprep.subr.mxu0 0.0
      %494 = vmatpush1.msra.mxu0 0.0
      %495 = vmatprep.subr.mxu0 0.0
      %496 = vmatpush1.msra.mxu0 0.0
      %497 = vmatprep.subr.mxu0 0.0
      %498 = vmatpush1.msra.mxu0 0.0
      %499 = vmatprep.subr.mxu0 0.0
      %500 = vmatpush1.msra.mxu0 0.0
      %501 = vmatprep.subr.mxu0 0.0
      %502 = vmatpush1.msra.mxu0 0.0
      %503 = vmatprep.subr.mxu0 0.0
      %504 = vmatpush1.msra.mxu0 0.0
      %505 = vmatprep.mubr.f32.mxu0 0.0
      %506 = vmatmul.mubr.f32.gmra.mrb[0].mxu0 %v346
      %v507 = vpop.f32.mrb[0].mxu0
      %v508 = vadd.f32 0.0, %v507
      %v509 = vpop.f32.mrb[0].mxu0
      %510 = vmatprep.mubr.f32.mxu0 0.0
      %511 = vmatmul.mubr.f32.gmra.mrb[0].mxu0 %v349
      %v512 = vpop.f32.mrb[0].mxu0
      %v513 = vadd.f32 0.0, %v512
      %v514 = vpop.f32.mrb[0].mxu0
      %515 = vmatprep.mubr.f32.mxu0 0.0
      %516 = vmatmul.mubr.f32.gmra.mrb[0].mxu0 %v352
      %v517 = vpop.f32.mrb[0].mxu0
      %v518 = vadd.f32 0.0, %v517
      %v519 = vpop.f32.mrb[0].mxu0
      %520 = vmatprep.mubr.f32.mxu0 0.0
      %521 = vmatmul.mubr.f32.gmra.mrb[0].mxu0 %v355
      %v522 = vpop.f32.mrb[0].mxu0
      %v523 = vadd.f32 0.0, %v522
      %v524 = vpop.f32.mrb[0].mxu0
      %525 = vmatprep.mubr.f32.mxu0 0.0
      %526 = vmatmul.mubr.f32.gmra.mrb[0].mxu0 %v358
      %v527 = vpop.f32.mrb[0].mxu0
      %v528 = vadd.f32 0.0, %v527
      %v529 = vpop.f32.mrb[0].mxu0
      %530 = vmatprep.mubr.f32.mxu0 0.0
      %531 = vmatmul.mubr.f32.gmra.mrb[0].mxu0 %v361
      %v532 = vpop.f32.mrb[0].mxu0
      %v533 = vadd.f32 0.0, %v532
      %v534 = vpop.f32.mrb[0].mxu0
      %535 = vmatprep.mubr.f32.mxu0 0.0
      %536 = vmatmul.mubr.f32.gmra.mrb[0].mxu0 %v364
      %v537 = vpop.f32.mrb[0].mxu0
      %v538 = vadd.f32 0.0, %v537
      %v539 = vpop.f32.mrb[0].mxu0
      %540 = vmatprep.mubr.f32.mxu0 0.0
      %541 = vmatmul.mubr.f32.gmra.mrb[0].mxu0 %v367
      %v542 = vpop.f32.mrb[0].mxu0
      %v543 = vadd.f32 0.0, %v542
      %v544 = vpop.f32.mrb[0].mxu0
      %545 = vmatprep.mubr.f32.mxu0 0.0
      %546 = vmatmul.mubr.f32.gmra.mrb[0].mxu0 %v370
      %v547 = vpop.f32.mrb[0].mxu0
      %v548 = vadd.f32 0.0, %v547
      %v549 = vpop.f32.mrb[0].mxu0
      %550 = vmatprep.mubr.f32.mxu0 0.0
      %551 = vmatmul.mubr.f32.gmra.mrb[0].mxu0 %v373
      %v552 = vpop.f32.mrb[0].mxu0
      %v553 = vadd.f32 0.0, %v552
      %v554 = vpop.f32.mrb[0].mxu0
      %555 = vmatprep.mubr.f32.mxu0 0.0
      %556 = vmatmul.mubr.f32.gmra.mrb[0].mxu0 %v376
      %v557 = vpop.f32.mrb[0].mxu0
      %v558 = vadd.f32 0.0, %v557
      %v559 = vpop.f32.mrb[0].mxu0
      %560 = vmatprep.mubr.f32.mxu0 0.0
      %561 = vmatmul.mubr.f32.gmra.mrb[0].mxu0 %v379
      %v562 = vpop.f32.mrb[0].mxu0
      %v563 = vadd.f32 0.0, %v562
      %v564 = vpop.f32.mrb[0].mxu0
      %565 = vmatprep.mubr.f32.mxu0 0.0
      %566 = vmatmul.mubr.f32.gmra.mrb[0].mxu0 %v382
      %v567 = vpop.f32.mrb[0].mxu0
      %v568 = vadd.f32 0.0, %v567
      %v569 = vpop.f32.mrb[0].mxu0
      %570 = vmatprep.mubr.f32.mxu0 0.0
      %571 = vmatmul.mubr.f32.gmra.mrb[0].mxu0 %v385
      %v572 = vpop.f32.mrb[0].mxu0
      %v573 = vadd.f32 0.0, %v572
      %v574 = vpop.f32.mrb[0].mxu0
      %575 = vmatprep.mubr.f32.mxu0 0.0
      %576 = vmatmul.mubr.f32.gmra.mrb[0].mxu0 %v388
      %v577 = vpop.f32.mrb[0].mxu0
      %v578 = vadd.f32 0.0, %v577
      %v579 = vpop.f32.mrb[0].mxu0
      %580 = vmatprep.mubr.f32.mxu0 0.0
      %581 = vmatmul.mubr.f32.gmra.mrb[0].mxu0 %v391
      %v582 = vpop.f32.mrb[0].mxu0
      %v583 = vadd.f32 0.0, %v582
      %v584 = vpop.f32.mrb[0].mxu0
      %585 = vmatprep.mubr.f32.mxu0 0.0
      %586 = vmatmul.mubr.f32.gmra.mrb[0].mxu0 %v394
      %v587 = vpop.f32.mrb[0].mxu0
      %v588 = vadd.f32 0.0, %v587
      %v589 = vpop.f32.mrb[0].mxu0
      %590 = vmatprep.mubr.f32.mxu0 0.0
      %591 = vmatmul.mubr.f32.gmra.mrb[0].mxu0 %v397
      %v592 = vpop.f32.mrb[0].mxu0
      %v593 = vadd.f32 0.0, %v592
      %v594 = vpop.f32.mrb[0].mxu0
      %595 = vmatprep.mubr.f32.mxu0 0.0
      %596 = vmatmul.mubr.f32.gmra.mrb[0].mxu0 %v400
      %v597 = vpop.f32.mrb[0].mxu0
      %v598 = vadd.f32 0.0, %v597
      %v599 = vpop.f32.mrb[0].mxu0
      %600 = vmatprep.mubr.f32.mxu0 0.0
      %601 = vmatmul.mubr.f32.gmra.mrb[0].mxu0 %v403
      %v602 = vpop.f32.mrb[0].mxu0
      %v603 = vadd.f32 0.0, %v602
      %v604 = vpop.f32.mrb[0].mxu0
      %605 = vmatprep.mubr.f32.mxu0 0.0
      %606 = vmatmul.mubr.f32.gmra.mrb[0].mxu0 %v406
      %v607 = vpop.f32.mrb[0].mxu0
      %v608 = vadd.f32 0.0, %v607
      %v609 = vpop.f32.mrb[0].mxu0
      %610 = vmatprep.mubr.f32.mxu0 0.0
      %611 = vmatmul.mubr.f32.gmra.mrb[0].mxu0 %v409
      %v612 = vpop.f32.mrb[0].mxu0
      %v613 = vadd.f32 0.0, %v612
      %v614 = vpop.f32.mrb[0].mxu0
      %615 = vmatprep.mubr.f32.mxu0 0.0
      %616 = vmatmul.mubr.f32.gmra.mrb[0].mxu0 %v412
      %v617 = vpop.f32.mrb[0].mxu0
      %v618 = vadd.f32 0.0, %v617
      %v619 = vpop.f32.mrb[0].mxu0
      %620 = vmatprep.mubr.f32.mxu0 0.0
      %621 = vmatmul.mubr.f32.gmra.mrb[0].mxu0 %v415
      %v622 = vpop.f32.mrb[0].mxu0
      %v623 = vadd.f32 0.0, %v622
      %v624 = vpop.f32.mrb[0].mxu0
      %625 = vmatprep.mubr.f32.mxu0 0.0
      %626 = vmatmul.mubr.f32.gmra.mrb[0].mxu0 %v418
      %v627 = vpop.f32.mrb[0].mxu0
      %v628 = vadd.f32 0.0, %v627
      %v629 = vpop.f32.mrb[0].mxu0
      %630 = vmatprep.mubr.f32.mxu0 0.0
      %631 = vmatmul.mubr.f32.gmra.mrb[0].mxu0 %v421
      %v632 = vpop.f32.mrb[0].mxu0
      %v633 = vadd.f32 0.0, %v632
      %v634 = vpop.f32.mrb[0].mxu0
      %635 = vmatprep.mubr.f32.mxu0 0.0
      %636 = vmatmul.mubr.f32.gmra.mrb[0].mxu0 %v424
      %v637 = vpop.f32.mrb[0].mxu0
      %v638 = vadd.f32 0.0, %v637
      %v639 = vpop.f32.mrb[0].mxu0
      %640 = vmatprep.mubr.f32.mxu0 0.0
      %641 = vmatmul.mubr.f32.gmra.mrb[0].mxu0 %v427
      %v642 = vpop.f32.mrb[0].mxu0
      %v643 = vadd.f32 0.0, %v642
      %v644 = vpop.f32.mrb[0].mxu0
      %645 = vmatprep.mubr.f32.mxu0 0.0
      %646 = vmatmul.mubr.f32.gmra.mrb[0].mxu0 %v430
      %v647 = vpop.f32.mrb[0].mxu0
      %v648 = vadd.f32 0.0, %v647
      %v649 = vpop.f32.mrb[0].mxu0
      %650 = vmatprep.mubr.f32.mxu0 0.0
      %651 = vmatmul.mubr.f32.gmra.mrb[0].mxu0 %v433
      %v652 = vpop.f32.mrb[0].mxu0
      %v653 = vadd.f32 0.0, %v652
      %v654 = vpop.f32.mrb[0].mxu0
      %655 = vmatprep.mubr.f32.mxu0 0.0
      %656 = vmatmul.mubr.f32.gmra.mrb[0].mxu0 %v436
      %v657 = vpop.f32.mrb[0].mxu0
      %v658 = vadd.f32 0.0, %v657
      %v659 = vpop.f32.mrb[0].mxu0
      %660 = vmatprep.mubr.f32.mxu0 0.0
      %661 = vmatmul.mubr.f32.gmra.mrb[0].mxu0 %v439
      %v662 = vpop.f32.mrb[0].mxu0
      %v663 = vadd.f32 0.0, %v662
      %v664 = vpop.f32.mrb[0].mxu0
      %665 = vdwg.mxu0
      %v666 = vld [vmem:[%s2] sm:$0x1]
      %v668 = vlaneseq
      %v669 = vshrl.u32 %v668, 7
      %v670 = vsub.s32 0, %v669
      %v671 = vrot.slane %v666, %v670
      %v673 = vsub.f32 %v508, %v671
      %v674 = vsub.f32 %v513, %v671
      %v675 = vsub.f32 %v518, %v671
      %v676 = vsub.f32 %v523, %v671
      %v677 = vsub.f32 %v528, %v671
      %v678 = vsub.f32 %v533, %v671
      %v679 = vsub.f32 %v538, %v671
      %v680 = vsub.f32 %v543, %v671
      %v681 = vsub.f32 %v548, %v671
      %v682 = vsub.f32 %v553, %v671
      %v683 = vsub.f32 %v558, %v671
      %v684 = vsub.f32 %v563, %v671
      %v685 = vsub.f32 %v568, %v671
      %v686 = vsub.f32 %v573, %v671
      %v687 = vsub.f32 %v578, %v671
      %v688 = vsub.f32 %v583, %v671
      %v689 = vsub.f32 %v588, %v671
      %v690 = vsub.f32 %v593, %v671
      %v691 = vsub.f32 %v598, %v671
      %v692 = vsub.f32 %v603, %v671
      %v693 = vsub.f32 %v608, %v671
      %v694 = vsub.f32 %v613, %v671
      %v695 = vsub.f32 %v618, %v671
      %v696 = vsub.f32 %v623, %v671
      %v697 = vsub.f32 %v628, %v671
      %v698 = vsub.f32 %v633, %v671
      %v699 = vsub.f32 %v638, %v671
      %v700 = vsub.f32 %v643, %v671
      %v701 = vsub.f32 %v648, %v671
      %v702 = vsub.f32 %v653, %v671
      %v703 = vsub.f32 %v658, %v671
      %v704 = vsub.f32 %v663, %v671
      %v705 = vstv %s310
      %v706 = vmul.f32 %v673, %v705
      %v707 = vmul.f32 %v674, %v705
      %v708 = vmul.f32 %v675, %v705
      %v709 = vmul.f32 %v676, %v705
      %v710 = vmul.f32 %v677, %v705
      %v711 = vmul.f32 %v678, %v705
      %v712 = vmul.f32 %v679, %v705
      %v713 = vmul.f32 %v680, %v705
      %v714 = vmul.f32 %v681, %v705
      %v715 = vmul.f32 %v682, %v705
      %v716 = vmul.f32 %v683, %v705
      %v717 = vmul.f32 %v684, %v705
      %v718 = vmul.f32 %v685, %v705
      %v719 = vmul.f32 %v686, %v705
      %v720 = vmul.f32 %v687, %v705
      %v721 = vmul.f32 %v688, %v705
      %v722 = vmul.f32 %v689, %v705
      %v723 = vmul.f32 %v690, %v705
      %v724 = vmul.f32 %v691, %v705
      %v725 = vmul.f32 %v692, %v705
      %v726 = vmul.f32 %v693, %v705
      %v727 = vmul.f32 %v694, %v705
      %v728 = vmul.f32 %v695, %v705
      %v729 = vmul.f32 %v696, %v705
      %v730 = vmul.f32 %v697, %v705
      %v731 = vmul.f32 %v698, %v705
      %v732 = vmul.f32 %v699, %v705
      %v733 = vmul.f32 %v700, %v705
      %v734 = vmul.f32 %v701, %v705
      %v735 = vmul.f32 %v702, %v705
      %v736 = vmul.f32 %v703, %v705
      %v737 = vmul.f32 %v704, %v705
      %v738 = vand.u32 2147483647, %v706
      %v739 = vand.u32 2147483647, %v707
      %v740 = vand.u32 2147483647, %v708
      %v741 = vand.u32 2147483647, %v709
      %v742 = vand.u32 2147483647, %v710
      %v743 = vand.u32 2147483647, %v711
      %v744 = vand.u32 2147483647, %v712
      %v745 = vand.u32 2147483647, %v713
      %v746 = vand.u32 2147483647, %v714
      %v747 = vand.u32 2147483647, %v715
      %v748 = vand.u32 2147483647, %v716
      %v749 = vand.u32 2147483647, %v717
      %v750 = vand.u32 2147483647, %v718
      %v751 = vand.u32 2147483647, %v719
      %v752 = vand.u32 2147483647, %v720
      %v753 = vand.u32 2147483647, %v721
      %v754 = vand.u32 2147483647, %v722
      %v755 = vand.u32 2147483647, %v723
      %v756 = vand.u32 2147483647, %v724
      %v757 = vand.u32 2147483647, %v725
      %v758 = vand.u32 2147483647, %v726
      %v759 = vand.u32 2147483647, %v727
      %v760 = vand.u32 2147483647, %v728
      %v761 = vand.u32 2147483647, %v729
      %v762 = vand.u32 2147483647, %v730
      %v763 = vand.u32 2147483647, %v731
      %v764 = vand.u32 2147483647, %v732
      %v765 = vand.u32 2147483647, %v733
      %v766 = vand.u32 2147483647, %v734
      %v767 = vand.u32 2147483647, %v735
      %v768 = vand.u32 2147483647, %v736
      %v769 = vand.u32 2147483647, %v737
      %v770 = vsub.f32 0.0, %v738
      %v771 = vsub.f32 0.0, %v739
      %v772 = vsub.f32 0.0, %v740
      %v773 = vsub.f32 0.0, %v741
      %v774 = vsub.f32 0.0, %v742
      %v775 = vsub.f32 0.0, %v743
      %v776 = vsub.f32 0.0, %v744
      %v777 = vsub.f32 0.0, %v745
      %v778 = vsub.f32 0.0, %v746
      %v779 = vsub.f32 0.0, %v747
      %v780 = vsub.f32 0.0, %v748
      %v781 = vsub.f32 0.0, %v749
      %v782 = vsub.f32 0.0, %v750
      %v783 = vsub.f32 0.0, %v751
      %v784 = vsub.f32 0.0, %v752
      %v785 = vsub.f32 0.0, %v753
      %v786 = vsub.f32 0.0, %v754
      %v787 = vsub.f32 0.0, %v755
      %v788 = vsub.f32 0.0, %v756
      %v789 = vsub.f32 0.0, %v757
      %v790 = vsub.f32 0.0, %v758
      %v791 = vsub.f32 0.0, %v759
      %v792 = vsub.f32 0.0, %v760
      %v793 = vsub.f32 0.0, %v761
      %v794 = vsub.f32 0.0, %v762
      %v795 = vsub.f32 0.0, %v763
      %v796 = vsub.f32 0.0, %v764
      %v797 = vsub.f32 0.0, %v765
      %v798 = vsub.f32 0.0, %v766
      %v799 = vsub.f32 0.0, %v767
      %v800 = vsub.f32 0.0, %v768
      %v801 = vsub.f32 0.0, %v769
      %v802 = vmul.f32 %v770, 1.442695
      %v803 = vpow.pop %v802
      %v804 = vmul.f32 %v771, 1.442695
      %v805 = vpow.pop %v804
      %v806 = vmul.f32 %v772, 1.442695
      %v807 = vpow.pop %v806
      %v808 = vmul.f32 %v773, 1.442695
      %v809 = vpow.pop %v808
      %v810 = vmul.f32 %v774, 1.442695
      %v811 = vpow.pop %v810
      %v812 = vmul.f32 %v775, 1.442695
      %v813 = vpow.pop %v812
      %v814 = vmul.f32 %v776, 1.442695
      %v815 = vpow.pop %v814
      %v816 = vmul.f32 %v777, 1.442695
      %v817 = vpow.pop %v816
      %v818 = vmul.f32 %v778, 1.442695
      %v819 = vpow.pop %v818
      %v820 = vmul.f32 %v779, 1.442695
      %v821 = vpow.pop %v820
      %v822 = vmul.f32 %v780, 1.442695
      %v823 = vpow.pop %v822
      %v824 = vmul.f32 %v781, 1.442695
      %v825 = vpow.pop %v824
      %v826 = vmul.f32 %v782, 1.442695
      %v827 = vpow.pop %v826
      %v828 = vmul.f32 %v783, 1.442695
      %v829 = vpow.pop %v828
      %v830 = vmul.f32 %v784, 1.442695
      %v831 = vpow.pop %v830
      %v832 = vmul.f32 %v785, 1.442695
      %v833 = vpow.pop %v832
      %v834 = vmul.f32 %v786, 1.442695
      %v835 = vpow.pop %v834
      %v836 = vmul.f32 %v787, 1.442695
      %v837 = vpow.pop %v836
      %v838 = vmul.f32 %v788, 1.442695
      %v839 = vpow.pop %v838
      %v840 = vmul.f32 %v789, 1.442695
      %v841 = vpow.pop %v840
      %v842 = vmul.f32 %v790, 1.442695
      %v843 = vpow.pop %v842
      %v844 = vmul.f32 %v791, 1.442695
      %v845 = vpow.pop %v844
      %v846 = vmul.f32 %v792, 1.442695
      %v847 = vpow.pop %v846
      %v848 = vmul.f32 %v793, 1.442695
      %v849 = vpow.pop %v848
      %v850 = vmul.f32 %v794, 1.442695
      %v851 = vpow.pop %v850
      %v852 = vmul.f32 %v795, 1.442695
      %v853 = vpow.pop %v852
      %v854 = vmul.f32 %v796, 1.442695
      %v855 = vpow.pop %v854
      %v856 = vmul.f32 %v797, 1.442695
      %v857 = vpow.pop %v856
      %v858 = vmul.f32 %v798, 1.442695
      %v859 = vpow.pop %v858
      %v860 = vmul.f32 %v799, 1.442695
      %v861 = vpow.pop %v860
      %v862 = vmul.f32 %v800, 1.442695
      %v863 = vpow.pop %v862
      %v864 = vmul.f32 %v801, 1.442695
      %v865 = vpow.pop %v864
      %v866 = vadd.f32 %v803, 1.0
      %v867 = vadd.f32 %v805, 1.0
      %v868 = vadd.f32 %v807, 1.0
      %v869 = vadd.f32 %v809, 1.0
      %v870 = vadd.f32 %v811, 1.0
      %v871 = vadd.f32 %v813, 1.0
      %v872 = vadd.f32 %v815, 1.0
      %v873 = vadd.f32 %v817, 1.0
      %v874 = vadd.f32 %v819, 1.0
      %v875 = vadd.f32 %v821, 1.0
      %v876 = vadd.f32 %v823, 1.0
      %v877 = vadd.f32 %v825, 1.0
      %v878 = vadd.f32 %v827, 1.0
      %v879 = vadd.f32 %v829, 1.0
      %v880 = vadd.f32 %v831, 1.0
      %v881 = vadd.f32 %v833, 1.0
      %v882 = vadd.f32 %v835, 1.0
      %v883 = vadd.f32 %v837, 1.0
      %v884 = vadd.f32 %v839, 1.0
      %v885 = vadd.f32 %v841, 1.0
      %v886 = vadd.f32 %v843, 1.0
      %v887 = vadd.f32 %v845, 1.0
      %v888 = vadd.f32 %v847, 1.0
      %v889 = vadd.f32 %v849, 1.0
      %v890 = vadd.f32 %v851, 1.0
      %v891 = vadd.f32 %v853, 1.0
      %v892 = vadd.f32 %v855, 1.0
      %v893 = vadd.f32 %v857, 1.0
      %v894 = vadd.f32 %v859, 1.0
      %v895 = vadd.f32 %v861, 1.0
      %v896 = vadd.f32 %v863, 1.0
      %v897 = vadd.f32 %v865, 1.0
      %v898 = vlog2.pop %v866
      %v899 = vmul.f32 %v898, 0.6931472
      %v900 = vlog2.pop %v867
      %v901 = vmul.f32 %v900, 0.6931472
      %v902 = vlog2.pop %v868
      %v903 = vmul.f32 %v902, 0.6931472
      %v904 = vlog2.pop %v869
      %v905 = vmul.f32 %v904, 0.6931472
      %v906 = vlog2.pop %v870
      %v907 = vmul.f32 %v906, 0.6931472
      %v908 = vlog2.pop %v871
      %v909 = vmul.f32 %v908, 0.6931472
      %v910 = vlog2.pop %v872
      %v911 = vmul.f32 %v910, 0.6931472
      %v912 = vlog2.pop %v873
      %v913 = vmul.f32 %v912, 0.6931472
      %v914 = vlog2.pop %v874
      %v915 = vmul.f32 %v914, 0.6931472
      %v916 = vlog2.pop %v875
      %v917 = vmul.f32 %v916, 0.6931472
      %v918 = vlog2.pop %v876
      %v919 = vmul.f32 %v918, 0.6931472
      %v920 = vlog2.pop %v877
      %v921 = vmul.f32 %v920, 0.6931472
      %v922 = vlog2.pop %v878
      %v923 = vmul.f32 %v922, 0.6931472
      %v924 = vlog2.pop %v879
      %v925 = vmul.f32 %v924, 0.6931472
      %v926 = vlog2.pop %v880
      %v927 = vmul.f32 %v926, 0.6931472
      %v928 = vlog2.pop %v881
      %v929 = vmul.f32 %v928, 0.6931472
      %v930 = vlog2.pop %v882
      %v931 = vmul.f32 %v930, 0.6931472
      %v932 = vlog2.pop %v883
      %v933 = vmul.f32 %v932, 0.6931472
      %v934 = vlog2.pop %v884
      %v935 = vmul.f32 %v934, 0.6931472
      %v936 = vlog2.pop %v885
      %v937 = vmul.f32 %v936, 0.6931472
      %v938 = vlog2.pop %v886
      %v939 = vmul.f32 %v938, 0.6931472
      %v940 = vlog2.pop %v887
      %v941 = vmul.f32 %v940, 0.6931472
      %v942 = vlog2.pop %v888
      %v943 = vmul.f32 %v942, 0.6931472
      %v944 = vlog2.pop %v889
      %v945 = vmul.f32 %v944, 0.6931472
      %v946 = vlog2.pop %v890
      %v947 = vmul.f32 %v946, 0.6931472
      %v948 = vlog2.pop %v891
      %v949 = vmul.f32 %v948, 0.6931472
      %v950 = vlog2.pop %v892
      %v951 = vmul.f32 %v950, 0.6931472
      %v952 = vlog2.pop %v893
      %v953 = vmul.f32 %v952, 0.6931472
      %v954 = vlog2.pop %v894
      %v955 = vmul.f32 %v954, 0.6931472
      %v956 = vlog2.pop %v895
      %v957 = vmul.f32 %v956, 0.6931472
      %v958 = vlog2.pop %v896
      %v959 = vmul.f32 %v958, 0.6931472
      %v960 = vlog2.pop %v897
      %v961 = vmul.f32 %v960, 0.6931472
      %v962 = vmin.f32 %v706, 0.0
      %v963 = vmin.f32 %v707, 0.0
      %v964 = vmin.f32 %v708, 0.0
      %v965 = vmin.f32 %v709, 0.0
      %v966 = vmin.f32 %v710, 0.0
      %v967 = vmin.f32 %v711, 0.0
      %v968 = vmin.f32 %v712, 0.0
      %v969 = vmin.f32 %v713, 0.0
      %v970 = vmin.f32 %v714, 0.0
      %v971 = vmin.f32 %v715, 0.0
      %v972 = vmin.f32 %v716, 0.0
      %v973 = vmin.f32 %v717, 0.0
      %v974 = vmin.f32 %v718, 0.0
      %v975 = vmin.f32 %v719, 0.0
      %v976 = vmin.f32 %v720, 0.0
      %v977 = vmin.f32 %v721, 0.0
      %v978 = vmin.f32 %v722, 0.0
      %v979 = vmin.f32 %v723, 0.0
      %v980 = vmin.f32 %v724, 0.0
      %v981 = vmin.f32 %v725, 0.0
      %v982 = vmin.f32 %v726, 0.0
      %v983 = vmin.f32 %v727, 0.0
      %v984 = vmin.f32 %v728, 0.0
      %v985 = vmin.f32 %v729, 0.0
      %v986 = vmin.f32 %v730, 0.0
      %v987 = vmin.f32 %v731, 0.0
      %v988 = vmin.f32 %v732, 0.0
      %v989 = vmin.f32 %v733, 0.0
      %v990 = vmin.f32 %v734, 0.0
      %v991 = vmin.f32 %v735, 0.0
      %v992 = vmin.f32 %v736, 0.0
      %v993 = vmin.f32 %v737, 0.0
      %v994 = vsub.f32 %v962, %v899
      %v995 = vsub.f32 %v963, %v901
      %v996 = vsub.f32 %v964, %v903
      %v997 = vsub.f32 %v965, %v905
      %v998 = vsub.f32 %v966, %v907
      %v999 = vsub.f32 %v967, %v909
      %v1000 = vsub.f32 %v968, %v911
      %v1001 = vsub.f32 %v969, %v913
      %v1002 = vsub.f32 %v970, %v915
      %v1003 = vsub.f32 %v971, %v917
      %v1004 = vsub.f32 %v972, %v919
      %v1005 = vsub.f32 %v973, %v921
      %v1006 = vsub.f32 %v974, %v923
      %v1007 = vsub.f32 %v975, %v925
      %v1008 = vsub.f32 %v976, %v927
      %v1009 = vsub.f32 %v977, %v929
      %v1010 = vsub.f32 %v978, %v931
      %v1011 = vsub.f32 %v979, %v933
      %v1012 = vsub.f32 %v980, %v935
      %v1013 = vsub.f32 %v981, %v937
      %v1014 = vsub.f32 %v982, %v939
      %v1015 = vsub.f32 %v983, %v941
      %v1016 = vsub.f32 %v984, %v943
      %v1017 = vsub.f32 %v985, %v945
      %v1018 = vsub.f32 %v986, %v947
      %v1019 = vsub.f32 %v987, %v949
      %v1020 = vsub.f32 %v988, %v951
      %v1021 = vsub.f32 %v989, %v953
      %v1022 = vsub.f32 %v990, %v955
      %v1023 = vsub.f32 %v991, %v957
      %v1024 = vsub.f32 %v992, %v959
      %v1025 = vsub.f32 %v993, %v961
      %v1026 = vsub.f32 0.0, %v706
      %v1027 = vsub.f32 0.0, %v707
      %v1028 = vsub.f32 0.0, %v708
      %v1029 = vsub.f32 0.0, %v709
      %v1030 = vsub.f32 0.0, %v710
      %v1031 = vsub.f32 0.0, %v711
      %v1032 = vsub.f32 0.0, %v712
      %v1033 = vsub.f32 0.0, %v713
      %v1034 = vsub.f32 0.0, %v714
      %v1035 = vsub.f32 0.0, %v715
      %v1036 = vsub.f32 0.0, %v716
      %v1037 = vsub.f32 0.0, %v717
      %v1038 = vsub.f32 0.0, %v718
      %v1039 = vsub.f32 0.0, %v719
      %v1040 = vsub.f32 0.0, %v720
      %v1041 = vsub.f32 0.0, %v721
      %v1042 = vsub.f32 0.0, %v722
      %v1043 = vsub.f32 0.0, %v723
      %v1044 = vsub.f32 0.0, %v724
      %v1045 = vsub.f32 0.0, %v725
      %v1046 = vsub.f32 0.0, %v726
      %v1047 = vsub.f32 0.0, %v727
      %v1048 = vsub.f32 0.0, %v728
      %v1049 = vsub.f32 0.0, %v729
      %v1050 = vsub.f32 0.0, %v730
      %v1051 = vsub.f32 0.0, %v731
      %v1052 = vsub.f32 0.0, %v732
      %v1053 = vsub.f32 0.0, %v733
      %v1054 = vsub.f32 0.0, %v734
      %v1055 = vsub.f32 0.0, %v735
      %v1056 = vsub.f32 0.0, %v736
      %v1057 = vsub.f32 0.0, %v737
      %v1058 = vmin.f32 %v1026, 0.0
      %v1059 = vmin.f32 %v1027, 0.0
      %v1060 = vmin.f32 %v1028, 0.0
      %v1061 = vmin.f32 %v1029, 0.0
      %v1062 = vmin.f32 %v1030, 0.0
      %v1063 = vmin.f32 %v1031, 0.0
      %v1064 = vmin.f32 %v1032, 0.0
      %v1065 = vmin.f32 %v1033, 0.0
      %v1066 = vmin.f32 %v1034, 0.0
      %v1067 = vmin.f32 %v1035, 0.0
      %v1068 = vmin.f32 %v1036, 0.0
      %v1069 = vmin.f32 %v1037, 0.0
      %v1070 = vmin.f32 %v1038, 0.0
      %v1071 = vmin.f32 %v1039, 0.0
      %v1072 = vmin.f32 %v1040, 0.0
      %v1073 = vmin.f32 %v1041, 0.0
      %v1074 = vmin.f32 %v1042, 0.0
      %v1075 = vmin.f32 %v1043, 0.0
      %v1076 = vmin.f32 %v1044, 0.0
      %v1077 = vmin.f32 %v1045, 0.0
      %v1078 = vmin.f32 %v1046, 0.0
      %v1079 = vmin.f32 %v1047, 0.0
      %v1080 = vmin.f32 %v1048, 0.0
      %v1081 = vmin.f32 %v1049, 0.0
      %v1082 = vmin.f32 %v1050, 0.0
      %v1083 = vmin.f32 %v1051, 0.0
      %v1084 = vmin.f32 %v1052, 0.0
      %v1085 = vmin.f32 %v1053, 0.0
      %v1086 = vmin.f32 %v1054, 0.0
      %v1087 = vmin.f32 %v1055, 0.0
      %v1088 = vmin.f32 %v1056, 0.0
      %v1089 = vmin.f32 %v1057, 0.0
      %v1090 = vsub.f32 %v1058, %v899
      %v1091 = vsub.f32 %v1059, %v901
      %v1092 = vsub.f32 %v1060, %v903
      %v1093 = vsub.f32 %v1061, %v905
      %v1094 = vsub.f32 %v1062, %v907
      %v1095 = vsub.f32 %v1063, %v909
      %v1096 = vsub.f32 %v1064, %v911
      %v1097 = vsub.f32 %v1065, %v913
      %v1098 = vsub.f32 %v1066, %v915
      %v1099 = vsub.f32 %v1067, %v917
      %v1100 = vsub.f32 %v1068, %v919
      %v1101 = vsub.f32 %v1069, %v921
      %v1102 = vsub.f32 %v1070, %v923
      %v1103 = vsub.f32 %v1071, %v925
      %v1104 = vsub.f32 %v1072, %v927
      %v1105 = vsub.f32 %v1073, %v929
      %v1106 = vsub.f32 %v1074, %v931
      %v1107 = vsub.f32 %v1075, %v933
      %v1108 = vsub.f32 %v1076, %v935
      %v1109 = vsub.f32 %v1077, %v937
      %v1110 = vsub.f32 %v1078, %v939
      %v1111 = vsub.f32 %v1079, %v941
      %v1112 = vsub.f32 %v1080, %v943
      %v1113 = vsub.f32 %v1081, %v945
      %v1114 = vsub.f32 %v1082, %v947
      %v1115 = vsub.f32 %v1083, %v949
      %v1116 = vsub.f32 %v1084, %v951
      %v1117 = vsub.f32 %v1085, %v953
      %v1118 = vsub.f32 %v1086, %v955
      %v1119 = vsub.f32 %v1087, %v957
      %v1120 = vsub.f32 %v1088, %v959
      %v1121 = vsub.f32 %v1089, %v961
      %v1122 = vld [vmem:[%s4] sm:$0xff]
      %v1123 = vld [vmem:[%s4 + $0x8] sm:$0xff]
      %v1124 = vld [vmem:[%s4 + $0x10] sm:$0xff]
      %v1125 = vld [vmem:[%s4 + $0x18] sm:$0xff]
      %v1126 = vld [vmem:[%s4 + $0x20] sm:$0xff]
      %v1127 = vld [vmem:[%s4 + $0x28] sm:$0xff]
      %v1128 = vld [vmem:[%s4 + $0x30] sm:$0xff]
      %v1129 = vld [vmem:[%s4 + $0x38] sm:$0xff]
      %v1130 = vld [vmem:[%s4 + $0x40] sm:$0xff]
      %v1131 = vld [vmem:[%s4 + $0x48] sm:$0xff]
      %v1132 = vld [vmem:[%s4 + $0x50] sm:$0xff]
      %v1133 = vld [vmem:[%s4 + $0x58] sm:$0xff]
      %v1134 = vld [vmem:[%s4 + $0x60] sm:$0xff]
      %v1135 = vld [vmem:[%s4 + $0x68] sm:$0xff]
      %v1136 = vld [vmem:[%s4 + $0x70] sm:$0xff]
      %v1137 = vld [vmem:[%s4 + $0x78] sm:$0xff]
      %v1138 = vld [vmem:[%s5] sm:$0xff]
      %v1139 = vld [vmem:[%s5 + $0x8] sm:$0xff]
      %v1140 = vld [vmem:[%s5 + $0x10] sm:$0xff]
      %v1141 = vld [vmem:[%s5 + $0x18] sm:$0xff]
      %v1142 = vld [vmem:[%s5 + $0x20] sm:$0xff]
      %v1143 = vld [vmem:[%s5 + $0x28] sm:$0xff]
      %v1144 = vld [vmem:[%s5 + $0x30] sm:$0xff]
      %v1145 = vld [vmem:[%s5 + $0x38] sm:$0xff]
      %v1146 = vld [vmem:[%s5 + $0x40] sm:$0xff]
      %v1147 = vld [vmem:[%s5 + $0x48] sm:$0xff]
      %v1148 = vld [vmem:[%s5 + $0x50] sm:$0xff]
      %v1149 = vld [vmem:[%s5 + $0x58] sm:$0xff]
      %v1150 = vld [vmem:[%s5 + $0x60] sm:$0xff]
      %v1151 = vld [vmem:[%s5 + $0x68] sm:$0xff]
      %v1152 = vld [vmem:[%s5 + $0x70] sm:$0xff]
      %v1153 = vld [vmem:[%s5 + $0x78] sm:$0xff]
      %1154 = vmatprep.subr.mxu0 0.0
      %1155 = vmatpush1.msra.mxu0 %v1138
      %1156 = vmatprep.subr.mxu0 0.0
      %1157 = vmatpush1.msra.mxu0 %v1139
      %1158 = vmatprep.subr.mxu0 0.0
      %1159 = vmatpush1.msra.mxu0 %v1140
      %1160 = vmatprep.subr.mxu0 0.0
      %1161 = vmatpush1.msra.mxu0 %v1141
      %1162 = vmatprep.subr.mxu0 0.0
      %1163 = vmatpush1.msra.mxu0 %v1142
      %1164 = vmatprep.subr.mxu0 0.0
      %1165 = vmatpush1.msra.mxu0 %v1143
      %1166 = vmatprep.subr.mxu0 0.0
      %1167 = vmatpush1.msra.mxu0 %v1144
      %1168 = vmatprep.subr.mxu0 0.0
      %1169 = vmatpush1.msra.mxu0 %v1145
      %1170 = vmatprep.subr.mxu0 0.0
      %1171 = vmatpush1.msra.mxu0 %v1146
      %1172 = vmatprep.subr.mxu0 0.0
      %1173 = vmatpush1.msra.mxu0 %v1147
      %1174 = vmatprep.subr.mxu0 0.0
      %1175 = vmatpush1.msra.mxu0 %v1148
      %1176 = vmatprep.subr.mxu0 0.0
      %1177 = vmatpush1.msra.mxu0 %v1149
      %1178 = vmatprep.subr.mxu0 0.0
      %1179 = vmatpush1.msra.mxu0 %v1150
      %1180 = vmatprep.subr.mxu0 0.0
      %1181 = vmatpush1.msra.mxu0 %v1151
      %1182 = vmatprep.subr.mxu0 0.0
      %1183 = vmatpush1.msra.mxu0 %v1152
      %1184 = vmatprep.subr.mxu0 0.0
      %1185 = vmatpush1.msra.mxu0 %v1153
      %1186 = vmatprep.subr.mxu0 0.0
      %1187 = vmatpush1.msra.mxu0 0.0
      %1188 = vmatprep.subr.mxu0 0.0
      %1189 = vmatpush1.msra.mxu0 0.0
      %1190 = vmatprep.subr.mxu0 0.0
      %1191 = vmatpush1.msra.mxu0 0.0
      %1192 = vmatprep.subr.mxu0 0.0
      %1193 = vmatpush1.msra.mxu0 0.0
      %1194 = vmatprep.subr.mxu0 0.0
      %1195 = vmatpush1.msra.mxu0 0.0
      %1196 = vmatprep.subr.mxu0 0.0
      %1197 = vmatpush1.msra.mxu0 0.0
      %1198 = vmatprep.subr.mxu0 0.0
      %1199 = vmatpush1.msra.mxu0 0.0
      %1200 = vmatprep.subr.mxu0 0.0
      %1201 = vmatpush1.msra.mxu0 0.0
      %1202 = vmatprep.subr.mxu0 0.0
      %1203 = vmatpush1.msra.mxu0 0.0
      %1204 = vmatprep.subr.mxu0 0.0
      %1205 = vmatpush1.msra.mxu0 0.0
      %1206 = vmatprep.subr.mxu0 0.0
      %1207 = vmatpush1.msra.mxu0 0.0
      %1208 = vmatprep.subr.mxu0 0.0
      %1209 = vmatpush1.msra.mxu0 0.0
      %1210 = vmatprep.subr.mxu0 0.0
      %1211 = vmatpush1.msra.mxu0 0.0
      %1212 = vmatprep.subr.mxu0 0.0
      %1213 = vmatpush1.msra.mxu0 0.0
      %1214 = vmatprep.subr.mxu0 0.0
      %1215 = vmatpush1.msra.mxu0 0.0
      %1216 = vmatprep.subr.mxu0 0.0
      %1217 = vmatpush1.msra.mxu0 0.0
      %1218 = vmatprep.mubr.f32.mxu0 0.0
      %1219 = vmatmul.mubr.f32.gmra.mrb[0].mxu0 %v1090
      %v1220 = vpop.f32.mrb[0].mxu0
      %v1221 = vadd.f32 0.0, %v1220
      %v1222 = vpop.f32.mrb[0].mxu0
      %1223 = vmatprep.mubr.f32.mxu0 0.0
      %1224 = vmatmul.mubr.f32.gmra.mrb[0].mxu0 %v1091
      %v1225 = vpop.f32.mrb[0].mxu0
      %v1226 = vadd.f32 0.0, %v1225
      %v1227 = vpop.f32.mrb[0].mxu0
      %1228 = vmatprep.mubr.f32.mxu0 0.0
      %1229 = vmatmul.mubr.f32.gmra.mrb[0].mxu0 %v1092
      %v1230 = vpop.f32.mrb[0].mxu0
      %v1231 = vadd.f32 0.0, %v1230
      %v1232 = vpop.f32.mrb[0].mxu0
      %1233 = vmatprep.mubr.f32.mxu0 0.0
      %1234 = vmatmul.mubr.f32.gmra.mrb[0].mxu0 %v1093
      %v1235 = vpop.f32.mrb[0].mxu0
      %v1236 = vadd.f32 0.0, %v1235
      %v1237 = vpop.f32.mrb[0].mxu0
      %1238 = vmatprep.mubr.f32.mxu0 0.0
      %1239 = vmatmul.mubr.f32.gmra.mrb[0].mxu0 %v1094
      %v1240 = vpop.f32.mrb[0].mxu0
      %v1241 = vadd.f32 0.0, %v1240
      %v1242 = vpop.f32.mrb[0].mxu0
      %1243 = vmatprep.mubr.f32.mxu0 0.0
      %1244 = vmatmul.mubr.f32.gmra.mrb[0].mxu0 %v1095
      %v1245 = vpop.f32.mrb[0].mxu0
      %v1246 = vadd.f32 0.0, %v1245
      %v1247 = vpop.f32.mrb[0].mxu0
      %1248 = vmatprep.mubr.f32.mxu0 0.0
      %1249 = vmatmul.mubr.f32.gmra.mrb[0].mxu0 %v1096
      %v1250 = vpop.f32.mrb[0].mxu0
      %v1251 = vadd.f32 0.0, %v1250
      %v1252 = vpop.f32.mrb[0].mxu0
      %1253 = vmatprep.mubr.f32.mxu0 0.0
      %1254 = vmatmul.mubr.f32.gmra.mrb[0].mxu0 %v1097
      %v1255 = vpop.f32.mrb[0].mxu0
      %v1256 = vadd.f32 0.0, %v1255
      %v1257 = vpop.f32.mrb[0].mxu0
      %1258 = vmatprep.mubr.f32.mxu0 0.0
      %1259 = vmatmul.mubr.f32.gmra.mrb[0].mxu0 %v1098
      %v1260 = vpop.f32.mrb[0].mxu0
      %v1261 = vadd.f32 0.0, %v1260
      %v1262 = vpop.f32.mrb[0].mxu0
      %1263 = vmatprep.mubr.f32.mxu0 0.0
      %1264 = vmatmul.mubr.f32.gmra.mrb[0].mxu0 %v1099
      %v1265 = vpop.f32.mrb[0].mxu0
      %v1266 = vadd.f32 0.0, %v1265
      %v1267 = vpop.f32.mrb[0].mxu0
      %1268 = vmatprep.mubr.f32.mxu0 0.0
      %1269 = vmatmul.mubr.f32.gmra.mrb[0].mxu0 %v1100
      %v1270 = vpop.f32.mrb[0].mxu0
      %v1271 = vadd.f32 0.0, %v1270
      %v1272 = vpop.f32.mrb[0].mxu0
      %1273 = vmatprep.mubr.f32.mxu0 0.0
      %1274 = vmatmul.mubr.f32.gmra.mrb[0].mxu0 %v1101
      %v1275 = vpop.f32.mrb[0].mxu0
      %v1276 = vadd.f32 0.0, %v1275
      %v1277 = vpop.f32.mrb[0].mxu0
      %1278 = vmatprep.mubr.f32.mxu0 0.0
      %1279 = vmatmul.mubr.f32.gmra.mrb[0].mxu0 %v1102
      %v1280 = vpop.f32.mrb[0].mxu0
      %v1281 = vadd.f32 0.0, %v1280
      %v1282 = vpop.f32.mrb[0].mxu0
      %1283 = vmatprep.mubr.f32.mxu0 0.0
      %1284 = vmatmul.mubr.f32.gmra.mrb[0].mxu0 %v1103
      %v1285 = vpop.f32.mrb[0].mxu0
      %v1286 = vadd.f32 0.0, %v1285
      %v1287 = vpop.f32.mrb[0].mxu0
      %1288 = vmatprep.mubr.f32.mxu0 0.0
      %1289 = vmatmul.mubr.f32.gmra.mrb[0].mxu0 %v1104
      %v1290 = vpop.f32.mrb[0].mxu0
      %v1291 = vadd.f32 0.0, %v1290
      %v1292 = vpop.f32.mrb[0].mxu0
      %1293 = vmatprep.mubr.f32.mxu0 0.0
      %1294 = vmatmul.mubr.f32.gmra.mrb[0].mxu0 %v1105
      %v1295 = vpop.f32.mrb[0].mxu0
      %v1296 = vadd.f32 0.0, %v1295
      %v1297 = vpop.f32.mrb[0].mxu0
      %1298 = vmatprep.mubr.f32.mxu0 0.0
      %1299 = vmatmul.mubr.f32.gmra.mrb[0].mxu0 %v1106
      %v1300 = vpop.f32.mrb[0].mxu0
      %v1301 = vadd.f32 0.0, %v1300
      %v1302 = vpop.f32.mrb[0].mxu0
      %1303 = vmatprep.mubr.f32.mxu0 0.0
      %1304 = vmatmul.mubr.f32.gmra.mrb[0].mxu0 %v1107
      %v1305 = vpop.f32.mrb[0].mxu0
      %v1306 = vadd.f32 0.0, %v1305
      %v1307 = vpop.f32.mrb[0].mxu0
      %1308 = vmatprep.mubr.f32.mxu0 0.0
      %1309 = vmatmul.mubr.f32.gmra.mrb[0].mxu0 %v1108
      %v1310 = vpop.f32.mrb[0].mxu0
      %v1311 = vadd.f32 0.0, %v1310
      %v1312 = vpop.f32.mrb[0].mxu0
      %1313 = vmatprep.mubr.f32.mxu0 0.0
      %1314 = vmatmul.mubr.f32.gmra.mrb[0].mxu0 %v1109
      %v1315 = vpop.f32.mrb[0].mxu0
      %v1316 = vadd.f32 0.0, %v1315
      %v1317 = vpop.f32.mrb[0].mxu0
      %1318 = vmatprep.mubr.f32.mxu0 0.0
      %1319 = vmatmul.mubr.f32.gmra.mrb[0].mxu0 %v1110
      %v1320 = vpop.f32.mrb[0].mxu0
      %v1321 = vadd.f32 0.0, %v1320
      %v1322 = vpop.f32.mrb[0].mxu0
      %1323 = vmatprep.mubr.f32.mxu0 0.0
      %1324 = vmatmul.mubr.f32.gmra.mrb[0].mxu0 %v1111
      %v1325 = vpop.f32.mrb[0].mxu0
      %v1326 = vadd.f32 0.0, %v1325
      %v1327 = vpop.f32.mrb[0].mxu0
      %1328 = vmatprep.mubr.f32.mxu0 0.0
      %1329 = vmatmul.mubr.f32.gmra.mrb[0].mxu0 %v1112
      %v1330 = vpop.f32.mrb[0].mxu0
      %v1331 = vadd.f32 0.0, %v1330
      %v1332 = vpop.f32.mrb[0].mxu0
      %1333 = vmatprep.mubr.f32.mxu0 0.0
      %1334 = vmatmul.mubr.f32.gmra.mrb[0].mxu0 %v1113
      %v1335 = vpop.f32.mrb[0].mxu0
      %v1336 = vadd.f32 0.0, %v1335
      %v1337 = vpop.f32.mrb[0].mxu0
      %1338 = vmatprep.mubr.f32.mxu0 0.0
      %1339 = vmatmul.mubr.f32.gmra.mrb[0].mxu0 %v1114
      %v1340 = vpop.f32.mrb[0].mxu0
      %v1341 = vadd.f32 0.0, %v1340
      %v1342 = vpop.f32.mrb[0].mxu0
      %1343 = vmatprep.mubr.f32.mxu0 0.0
      %1344 = vmatmul.mubr.f32.gmra.mrb[0].mxu0 %v1115
      %v1345 = vpop.f32.mrb[0].mxu0
      %v1346 = vadd.f32 0.0, %v1345
      %v1347 = vpop.f32.mrb[0].mxu0
      %1348 = vmatprep.mubr.f32.mxu0 0.0
      %1349 = vmatmul.mubr.f32.gmra.mrb[0].mxu0 %v1116
      %v1350 = vpop.f32.mrb[0].mxu0
      %v1351 = vadd.f32 0.0, %v1350
      %v1352 = vpop.f32.mrb[0].mxu0
      %1353 = vmatprep.mubr.f32.mxu0 0.0
      %1354 = vmatmul.mubr.f32.gmra.mrb[0].mxu0 %v1117
      %v1355 = vpop.f32.mrb[0].mxu0
      %v1356 = vadd.f32 0.0, %v1355
      %v1357 = vpop.f32.mrb[0].mxu0
      %1358 = vmatprep.mubr.f32.mxu0 0.0
      %1359 = vmatmul.mubr.f32.gmra.mrb[0].mxu0 %v1118
      %v1360 = vpop.f32.mrb[0].mxu0
      %v1361 = vadd.f32 0.0, %v1360
      %v1362 = vpop.f32.mrb[0].mxu0
      %1363 = vmatprep.mubr.f32.mxu0 0.0
      %1364 = vmatmul.mubr.f32.gmra.mrb[0].mxu0 %v1119
      %v1365 = vpop.f32.mrb[0].mxu0
      %v1366 = vadd.f32 0.0, %v1365
      %v1367 = vpop.f32.mrb[0].mxu0
      %1368 = vmatprep.mubr.f32.mxu0 0.0
      %1369 = vmatmul.mubr.f32.gmra.mrb[0].mxu0 %v1120
      %v1370 = vpop.f32.mrb[0].mxu0
      %v1371 = vadd.f32 0.0, %v1370
      %v1372 = vpop.f32.mrb[0].mxu0
      %1373 = vmatprep.mubr.f32.mxu0 0.0
      %1374 = vmatmul.mubr.f32.gmra.mrb[0].mxu0 %v1121
      %v1375 = vpop.f32.mrb[0].mxu0
      %v1376 = vadd.f32 0.0, %v1375
      %v1377 = vpop.f32.mrb[0].mxu0
      %1378 = vdwg.mxu0
      %1379 = vmatprep.subr.mxu0 0.0
      %1380 = vmatpush1.msra.mxu0 %v1122
      %1381 = vmatprep.subr.mxu0 0.0
      %1382 = vmatpush1.msra.mxu0 %v1123
      %1383 = vmatprep.subr.mxu0 0.0
      %1384 = vmatpush1.msra.mxu0 %v1124
      %1385 = vmatprep.subr.mxu0 0.0
      %1386 = vmatpush1.msra.mxu0 %v1125
      %1387 = vmatprep.subr.mxu0 0.0
      %1388 = vmatpush1.msra.mxu0 %v1126
      %1389 = vmatprep.subr.mxu0 0.0
      %1390 = vmatpush1.msra.mxu0 %v1127
      %1391 = vmatprep.subr.mxu0 0.0
      %1392 = vmatpush1.msra.mxu0 %v1128
      %1393 = vmatprep.subr.mxu0 0.0
      %1394 = vmatpush1.msra.mxu0 %v1129
      %1395 = vmatprep.subr.mxu0 0.0
      %1396 = vmatpush1.msra.mxu0 %v1130
      %1397 = vmatprep.subr.mxu0 0.0
      %1398 = vmatpush1.msra.mxu0 %v1131
      %1399 = vmatprep.subr.mxu0 0.0
      %1400 = vmatpush1.msra.mxu0 %v1132
      %1401 = vmatprep.subr.mxu0 0.0
      %1402 = vmatpush1.msra.mxu0 %v1133
      %1403 = vmatprep.subr.mxu0 0.0
      %1404 = vmatpush1.msra.mxu0 %v1134
      %1405 = vmatprep.subr.mxu0 0.0
      %1406 = vmatpush1.msra.mxu0 %v1135
      %1407 = vmatprep.subr.mxu0 0.0
      %1408 = vmatpush1.msra.mxu0 %v1136
      %1409 = vmatprep.subr.mxu0 0.0
      %1410 = vmatpush1.msra.mxu0 %v1137
      %1411 = vmatprep.subr.mxu0 0.0
      %1412 = vmatpush1.msra.mxu0 0.0
      %1413 = vmatprep.subr.mxu0 0.0
      %1414 = vmatpush1.msra.mxu0 0.0
      %1415 = vmatprep.subr.mxu0 0.0
      %1416 = vmatpush1.msra.mxu0 0.0
      %1417 = vmatprep.subr.mxu0 0.0
      %1418 = vmatpush1.msra.mxu0 0.0
      %1419 = vmatprep.subr.mxu0 0.0
      %1420 = vmatpush1.msra.mxu0 0.0
      %1421 = vmatprep.subr.mxu0 0.0
      %1422 = vmatpush1.msra.mxu0 0.0
      %1423 = vmatprep.subr.mxu0 0.0
      %1424 = vmatpush1.msra.mxu0 0.0
      %1425 = vmatprep.subr.mxu0 0.0
      %1426 = vmatpush1.msra.mxu0 0.0
      %1427 = vmatprep.subr.mxu0 0.0
      %1428 = vmatpush1.msra.mxu0 0.0
      %1429 = vmatprep.subr.mxu0 0.0
      %1430 = vmatpush1.msra.mxu0 0.0
      %1431 = vmatprep.subr.mxu0 0.0
      %1432 = vmatpush1.msra.mxu0 0.0
      %1433 = vmatprep.subr.mxu0 0.0
      %1434 = vmatpush1.msra.mxu0 0.0
      %1435 = vmatprep.subr.mxu0 0.0
      %1436 = vmatpush1.msra.mxu0 0.0
      %1437 = vmatprep.subr.mxu0 0.0
      %1438 = vmatpush1.msra.mxu0 0.0
      %1439 = vmatprep.subr.mxu0 0.0
      %1440 = vmatpush1.msra.mxu0 0.0
      %1441 = vmatprep.subr.mxu0 0.0
      %1442 = vmatpush1.msra.mxu0 0.0
      %1443 = vmatprep.mubr.f32.mxu0 0.0
      %1444 = vmatmul.mubr.f32.gmra.mrb[0].mxu0 %v994
      %v1445 = vpop.f32.mrb[0].mxu0
      %v1446 = vadd.f32 %v1221, %v1445
      %v1447 = vpop.f32.mrb[0].mxu0
      %1448 = vmatprep.mubr.f32.mxu0 0.0
      %1449 = vmatmul.mubr.f32.gmra.mrb[0].mxu0 %v995
      %v1450 = vpop.f32.mrb[0].mxu0
      %v1451 = vadd.f32 %v1226, %v1450
      %v1452 = vpop.f32.mrb[0].mxu0
      %1453 = vmatprep.mubr.f32.mxu0 0.0
      %1454 = vmatmul.mubr.f32.gmra.mrb[0].mxu0 %v996
      %v1455 = vpop.f32.mrb[0].mxu0
      %v1456 = vadd.f32 %v1231, %v1455
      %v1457 = vpop.f32.mrb[0].mxu0
      %1458 = vmatprep.mubr.f32.mxu0 0.0
      %1459 = vmatmul.mubr.f32.gmra.mrb[0].mxu0 %v997
      %v1460 = vpop.f32.mrb[0].mxu0
      %v1461 = vadd.f32 %v1236, %v1460
      %v1462 = vpop.f32.mrb[0].mxu0
      %1463 = vmatprep.mubr.f32.mxu0 0.0
      %1464 = vmatmul.mubr.f32.gmra.mrb[0].mxu0 %v998
      %v1465 = vpop.f32.mrb[0].mxu0
      %v1466 = vadd.f32 %v1241, %v1465
      %v1467 = vpop.f32.mrb[0].mxu0
      %1468 = vmatprep.mubr.f32.mxu0 0.0
      %1469 = vmatmul.mubr.f32.gmra.mrb[0].mxu0 %v999
      %v1470 = vpop.f32.mrb[0].mxu0
      %v1471 = vadd.f32 %v1246, %v1470
      %v1472 = vpop.f32.mrb[0].mxu0
      %1473 = vmatprep.mubr.f32.mxu0 0.0
      %1474 = vmatmul.mubr.f32.gmra.mrb[0].mxu0 %v1000
      %v1475 = vpop.f32.mrb[0].mxu0
      %v1476 = vadd.f32 %v1251, %v1475
      %v1477 = vpop.f32.mrb[0].mxu0
      %1478 = vmatprep.mubr.f32.mxu0 0.0
      %1479 = vmatmul.mubr.f32.gmra.mrb[0].mxu0 %v1001
      %v1480 = vpop.f32.mrb[0].mxu0
      %v1481 = vadd.f32 %v1256, %v1480
      %v1482 = vpop.f32.mrb[0].mxu0
      %1483 = vmatprep.mubr.f32.mxu0 0.0
      %1484 = vmatmul.mubr.f32.gmra.mrb[0].mxu0 %v1002
      %v1485 = vpop.f32.mrb[0].mxu0
      %v1486 = vadd.f32 %v1261, %v1485
      %v1487 = vpop.f32.mrb[0].mxu0
      %1488 = vmatprep.mubr.f32.mxu0 0.0
      %1489 = vmatmul.mubr.f32.gmra.mrb[0].mxu0 %v1003
      %v1490 = vpop.f32.mrb[0].mxu0
      %v1491 = vadd.f32 %v1266, %v1490
      %v1492 = vpop.f32.mrb[0].mxu0
      %1493 = vmatprep.mubr.f32.mxu0 0.0
      %1494 = vmatmul.mubr.f32.gmra.mrb[0].mxu0 %v1004
      %v1495 = vpop.f32.mrb[0].mxu0
      %v1496 = vadd.f32 %v1271, %v1495
      %v1497 = vpop.f32.mrb[0].mxu0
      %1498 = vmatprep.mubr.f32.mxu0 0.0
      %1499 = vmatmul.mubr.f32.gmra.mrb[0].mxu0 %v1005
      %v1500 = vpop.f32.mrb[0].mxu0
      %v1501 = vadd.f32 %v1276, %v1500
      %v1502 = vpop.f32.mrb[0].mxu0
      %1503 = vmatprep.mubr.f32.mxu0 0.0
      %1504 = vmatmul.mubr.f32.gmra.mrb[0].mxu0 %v1006
      %v1505 = vpop.f32.mrb[0].mxu0
      %v1506 = vadd.f32 %v1281, %v1505
      %v1507 = vpop.f32.mrb[0].mxu0
      %1508 = vmatprep.mubr.f32.mxu0 0.0
      %1509 = vmatmul.mubr.f32.gmra.mrb[0].mxu0 %v1007
      %v1510 = vpop.f32.mrb[0].mxu0
      %v1511 = vadd.f32 %v1286, %v1510
      %v1512 = vpop.f32.mrb[0].mxu0
      %1513 = vmatprep.mubr.f32.mxu0 0.0
      %1514 = vmatmul.mubr.f32.gmra.mrb[0].mxu0 %v1008
      %v1515 = vpop.f32.mrb[0].mxu0
      %v1516 = vadd.f32 %v1291, %v1515
      %v1517 = vpop.f32.mrb[0].mxu0
      %1518 = vmatprep.mubr.f32.mxu0 0.0
      %1519 = vmatmul.mubr.f32.gmra.mrb[0].mxu0 %v1009
      %v1520 = vpop.f32.mrb[0].mxu0
      %v1521 = vadd.f32 %v1296, %v1520
      %v1522 = vpop.f32.mrb[0].mxu0
      %1523 = vmatprep.mubr.f32.mxu0 0.0
      %1524 = vmatmul.mubr.f32.gmra.mrb[0].mxu0 %v1010
      %v1525 = vpop.f32.mrb[0].mxu0
      %v1526 = vadd.f32 %v1301, %v1525
      %v1527 = vpop.f32.mrb[0].mxu0
      %1528 = vmatprep.mubr.f32.mxu0 0.0
      %1529 = vmatmul.mubr.f32.gmra.mrb[0].mxu0 %v1011
      %v1530 = vpop.f32.mrb[0].mxu0
      %v1531 = vadd.f32 %v1306, %v1530
      %v1532 = vpop.f32.mrb[0].mxu0
      %1533 = vmatprep.mubr.f32.mxu0 0.0
      %1534 = vmatmul.mubr.f32.gmra.mrb[0].mxu0 %v1012
      %v1535 = vpop.f32.mrb[0].mxu0
      %v1536 = vadd.f32 %v1311, %v1535
      %v1537 = vpop.f32.mrb[0].mxu0
      %1538 = vmatprep.mubr.f32.mxu0 0.0
      %1539 = vmatmul.mubr.f32.gmra.mrb[0].mxu0 %v1013
      %v1540 = vpop.f32.mrb[0].mxu0
      %v1541 = vadd.f32 %v1316, %v1540
      %v1542 = vpop.f32.mrb[0].mxu0
      %1543 = vmatprep.mubr.f32.mxu0 0.0
      %1544 = vmatmul.mubr.f32.gmra.mrb[0].mxu0 %v1014
      %v1545 = vpop.f32.mrb[0].mxu0
      %v1546 = vadd.f32 %v1321, %v1545
      %v1547 = vpop.f32.mrb[0].mxu0
      %1548 = vmatprep.mubr.f32.mxu0 0.0
      %1549 = vmatmul.mubr.f32.gmra.mrb[0].mxu0 %v1015
      %v1550 = vpop.f32.mrb[0].mxu0
      %v1551 = vadd.f32 %v1326, %v1550
      %v1552 = vpop.f32.mrb[0].mxu0
      %1553 = vmatprep.mubr.f32.mxu0 0.0
      %1554 = vmatmul.mubr.f32.gmra.mrb[0].mxu0 %v1016
      %v1555 = vpop.f32.mrb[0].mxu0
      %v1556 = vadd.f32 %v1331, %v1555
      %v1557 = vpop.f32.mrb[0].mxu0
      %1558 = vmatprep.mubr.f32.mxu0 0.0
      %1559 = vmatmul.mubr.f32.gmra.mrb[0].mxu0 %v1017
      %v1560 = vpop.f32.mrb[0].mxu0
      %v1561 = vadd.f32 %v1336, %v1560
      %v1562 = vpop.f32.mrb[0].mxu0
      %1563 = vmatprep.mubr.f32.mxu0 0.0
      %1564 = vmatmul.mubr.f32.gmra.mrb[0].mxu0 %v1018
      %v1565 = vpop.f32.mrb[0].mxu0
      %v1566 = vadd.f32 %v1341, %v1565
      %v1567 = vpop.f32.mrb[0].mxu0
      %1568 = vmatprep.mubr.f32.mxu0 0.0
      %1569 = vmatmul.mubr.f32.gmra.mrb[0].mxu0 %v1019
      %v1570 = vpop.f32.mrb[0].mxu0
      %v1571 = vadd.f32 %v1346, %v1570
      %v1572 = vpop.f32.mrb[0].mxu0
      %1573 = vmatprep.mubr.f32.mxu0 0.0
      %1574 = vmatmul.mubr.f32.gmra.mrb[0].mxu0 %v1020
      %v1575 = vpop.f32.mrb[0].mxu0
      %v1576 = vadd.f32 %v1351, %v1575
      %v1577 = vpop.f32.mrb[0].mxu0
      %1578 = vmatprep.mubr.f32.mxu0 0.0
      %1579 = vmatmul.mubr.f32.gmra.mrb[0].mxu0 %v1021
      %v1580 = vpop.f32.mrb[0].mxu0
      %v1581 = vadd.f32 %v1356, %v1580
      %v1582 = vpop.f32.mrb[0].mxu0
      %1583 = vmatprep.mubr.f32.mxu0 0.0
      %1584 = vmatmul.mubr.f32.gmra.mrb[0].mxu0 %v1022
      %v1585 = vpop.f32.mrb[0].mxu0
      %v1586 = vadd.f32 %v1361, %v1585
      %v1587 = vpop.f32.mrb[0].mxu0
      %1588 = vmatprep.mubr.f32.mxu0 0.0
      %1589 = vmatmul.mubr.f32.gmra.mrb[0].mxu0 %v1023
      %v1590 = vpop.f32.mrb[0].mxu0
      %v1591 = vadd.f32 %v1366, %v1590
      %v1592 = vpop.f32.mrb[0].mxu0
      %1593 = vmatprep.mubr.f32.mxu0 0.0
      %1594 = vmatmul.mubr.f32.gmra.mrb[0].mxu0 %v1024
      %v1595 = vpop.f32.mrb[0].mxu0
      %v1596 = vadd.f32 %v1371, %v1595
      %v1597 = vpop.f32.mrb[0].mxu0
      %1598 = vmatprep.mubr.f32.mxu0 0.0
      %1599 = vmatmul.mubr.f32.gmra.mrb[0].mxu0 %v1025
      %v1600 = vpop.f32.mrb[0].mxu0
      %v1601 = vadd.f32 %v1376, %v1600
      %v1602 = vpop.f32.mrb[0].mxu0
      %1603 = vdwg.mxu0
      %v1604 = vld [vmem:[%s6] sm:$0x1]
      %v1606 = vlaneseq
      %v1607 = vshrl.u32 %v1606, 7
      %v1608 = vsub.s32 0, %v1607
      %v1609 = vrot.slane %v1604, %v1608
      %v1611 = vadd.f32 %v1446, %v1609
      %v1612 = vadd.f32 %v1451, %v1609
      %v1613 = vadd.f32 %v1456, %v1609
      %v1614 = vadd.f32 %v1461, %v1609
      %v1615 = vadd.f32 %v1466, %v1609
      %v1616 = vadd.f32 %v1471, %v1609
      %v1617 = vadd.f32 %v1476, %v1609
      %v1618 = vadd.f32 %v1481, %v1609
      %v1619 = vadd.f32 %v1486, %v1609
      %v1620 = vadd.f32 %v1491, %v1609
      %v1621 = vadd.f32 %v1496, %v1609
      %v1622 = vadd.f32 %v1501, %v1609
      %v1623 = vadd.f32 %v1506, %v1609
      %v1624 = vadd.f32 %v1511, %v1609
      %v1625 = vadd.f32 %v1516, %v1609
      %v1626 = vadd.f32 %v1521, %v1609
      %v1627 = vadd.f32 %v1526, %v1609
      %v1628 = vadd.f32 %v1531, %v1609
      %v1629 = vadd.f32 %v1536, %v1609
      %v1630 = vadd.f32 %v1541, %v1609
      %v1631 = vadd.f32 %v1546, %v1609
      %v1632 = vadd.f32 %v1551, %v1609
      %v1633 = vadd.f32 %v1556, %v1609
      %v1634 = vadd.f32 %v1561, %v1609
      %v1635 = vadd.f32 %v1566, %v1609
      %v1636 = vadd.f32 %v1571, %v1609
      %v1637 = vadd.f32 %v1576, %v1609
      %v1638 = vadd.f32 %v1581, %v1609
      %v1639 = vadd.f32 %v1586, %v1609
      %v1640 = vadd.f32 %v1591, %v1609
      %v1641 = vadd.f32 %v1596, %v1609
      %v1642 = vadd.f32 %v1601, %v1609
      %v1643 = vmul.f32 %v1611, 1.442695
      %v1644 = vpow.pop %v1643
      %v1645 = vmul.f32 %v1612, 1.442695
      %v1646 = vpow.pop %v1645
      %v1647 = vmul.f32 %v1613, 1.442695
      %v1648 = vpow.pop %v1647
      %v1649 = vmul.f32 %v1614, 1.442695
      %v1650 = vpow.pop %v1649
      %v1651 = vmul.f32 %v1615, 1.442695
      %v1652 = vpow.pop %v1651
      %v1653 = vmul.f32 %v1616, 1.442695
      %v1654 = vpow.pop %v1653
      %v1655 = vmul.f32 %v1617, 1.442695
      %v1656 = vpow.pop %v1655
      %v1657 = vmul.f32 %v1618, 1.442695
      %v1658 = vpow.pop %v1657
      %v1659 = vmul.f32 %v1619, 1.442695
      %v1660 = vpow.pop %v1659
      %v1661 = vmul.f32 %v1620, 1.442695
      %v1662 = vpow.pop %v1661
      %v1663 = vmul.f32 %v1621, 1.442695
      %v1664 = vpow.pop %v1663
      %v1665 = vmul.f32 %v1622, 1.442695
      %v1666 = vpow.pop %v1665
      %v1667 = vmul.f32 %v1623, 1.442695
      %v1668 = vpow.pop %v1667
      %v1669 = vmul.f32 %v1624, 1.442695
      %v1670 = vpow.pop %v1669
      %v1671 = vmul.f32 %v1625, 1.442695
      %v1672 = vpow.pop %v1671
      %v1673 = vmul.f32 %v1626, 1.442695
      %v1674 = vpow.pop %v1673
      %v1675 = vmul.f32 %v1627, 1.442695
      %v1676 = vpow.pop %v1675
      %v1677 = vmul.f32 %v1628, 1.442695
      %v1678 = vpow.pop %v1677
      %v1679 = vmul.f32 %v1629, 1.442695
      %v1680 = vpow.pop %v1679
      %v1681 = vmul.f32 %v1630, 1.442695
      %v1682 = vpow.pop %v1681
      %v1683 = vmul.f32 %v1631, 1.442695
      %v1684 = vpow.pop %v1683
      %v1685 = vmul.f32 %v1632, 1.442695
      %v1686 = vpow.pop %v1685
      %v1687 = vmul.f32 %v1633, 1.442695
      %v1688 = vpow.pop %v1687
      %v1689 = vmul.f32 %v1634, 1.442695
      %v1690 = vpow.pop %v1689
      %v1691 = vmul.f32 %v1635, 1.442695
      %v1692 = vpow.pop %v1691
      %v1693 = vmul.f32 %v1636, 1.442695
      %v1694 = vpow.pop %v1693
      %v1695 = vmul.f32 %v1637, 1.442695
      %v1696 = vpow.pop %v1695
      %v1697 = vmul.f32 %v1638, 1.442695
      %v1698 = vpow.pop %v1697
      %v1699 = vmul.f32 %v1639, 1.442695
      %v1700 = vpow.pop %v1699
      %v1701 = vmul.f32 %v1640, 1.442695
      %v1702 = vpow.pop %v1701
      %v1703 = vmul.f32 %v1641, 1.442695
      %v1704 = vpow.pop %v1703
      %v1705 = vmul.f32 %v1642, 1.442695
      %v1706 = vpow.pop %v1705
      %v1707 = vld [vmem:[%s7] sm:$0xff]
      %v1708 = vld [vmem:[%s7 + $0x8] sm:$0xff]
      %v1709 = vld [vmem:[%s7 + $0x10] sm:$0xff]
      %v1710 = vld [vmem:[%s7 + $0x18] sm:$0xff]
      %v1711 = vld [vmem:[%s7 + $0x20] sm:$0xff]
      %v1712 = vld [vmem:[%s7 + $0x28] sm:$0xff]
      %v1713 = vld [vmem:[%s7 + $0x30] sm:$0xff]
      %v1714 = vld [vmem:[%s7 + $0x38] sm:$0xff]
      %v1715 = vld [vmem:[%s7 + $0x40] sm:$0xff]
      %v1716 = vld [vmem:[%s7 + $0x48] sm:$0xff]
      %v1717 = vld [vmem:[%s7 + $0x50] sm:$0xff]
      %v1718 = vld [vmem:[%s7 + $0x58] sm:$0xff]
      %v1719 = vld [vmem:[%s7 + $0x60] sm:$0xff]
      %v1720 = vld [vmem:[%s7 + $0x68] sm:$0xff]
      %v1721 = vld [vmem:[%s7 + $0x70] sm:$0xff]
      %v1722 = vld [vmem:[%s7 + $0x78] sm:$0xff]
      %1723 = vmatprep.subr.mxu0 0.0
      %1724 = vmatpush1.msra.mxu0 %v1707
      %1725 = vmatprep.subr.mxu0 0.0
      %1726 = vmatpush1.msra.mxu0 %v1708
      %1727 = vmatprep.subr.mxu0 0.0
      %1728 = vmatpush1.msra.mxu0 %v1709
      %1729 = vmatprep.subr.mxu0 0.0
      %1730 = vmatpush1.msra.mxu0 %v1710
      %1731 = vmatprep.subr.mxu0 0.0
      %1732 = vmatpush1.msra.mxu0 %v1711
      %1733 = vmatprep.subr.mxu0 0.0
      %1734 = vmatpush1.msra.mxu0 %v1712
      %1735 = vmatprep.subr.mxu0 0.0
      %1736 = vmatpush1.msra.mxu0 %v1713
      %1737 = vmatprep.subr.mxu0 0.0
      %1738 = vmatpush1.msra.mxu0 %v1714
      %1739 = vmatprep.subr.mxu0 0.0
      %1740 = vmatpush1.msra.mxu0 %v1715
      %1741 = vmatprep.subr.mxu0 0.0
      %1742 = vmatpush1.msra.mxu0 %v1716
      %1743 = vmatprep.subr.mxu0 0.0
      %1744 = vmatpush1.msra.mxu0 %v1717
      %1745 = vmatprep.subr.mxu0 0.0
      %1746 = vmatpush1.msra.mxu0 %v1718
      %1747 = vmatprep.subr.mxu0 0.0
      %1748 = vmatpush1.msra.mxu0 %v1719
      %1749 = vmatprep.subr.mxu0 0.0
      %1750 = vmatpush1.msra.mxu0 %v1720
      %1751 = vmatprep.subr.mxu0 0.0
      %1752 = vmatpush1.msra.mxu0 %v1721
      %1753 = vmatprep.subr.mxu0 0.0
      %1754 = vmatpush1.msra.mxu0 %v1722
      %1755 = vmatprep.subr.mxu0 0.0
      %1756 = vmatpush1.msra.mxu0 0.0
      %1757 = vmatprep.subr.mxu0 0.0
      %1758 = vmatpush1.msra.mxu0 0.0
      %1759 = vmatprep.subr.mxu0 0.0
      %1760 = vmatpush1.msra.mxu0 0.0
      %1761 = vmatprep.subr.mxu0 0.0
      %1762 = vmatpush1.msra.mxu0 0.0
      %1763 = vmatprep.subr.mxu0 0.0
      %1764 = vmatpush1.msra.mxu0 0.0
      %1765 = vmatprep.subr.mxu0 0.0
      %1766 = vmatpush1.msra.mxu0 0.0
      %1767 = vmatprep.subr.mxu0 0.0
      %1768 = vmatpush1.msra.mxu0 0.0
      %1769 = vmatprep.subr.mxu0 0.0
      %1770 = vmatpush1.msra.mxu0 0.0
      %1771 = vmatprep.subr.mxu0 0.0
      %1772 = vmatpush1.msra.mxu0 0.0
      %1773 = vmatprep.subr.mxu0 0.0
      %1774 = vmatpush1.msra.mxu0 0.0
      %1775 = vmatprep.subr.mxu0 0.0
      %1776 = vmatpush1.msra.mxu0 0.0
      %1777 = vmatprep.subr.mxu0 0.0
      %1778 = vmatpush1.msra.mxu0 0.0
      %1779 = vmatprep.subr.mxu0 0.0
      %1780 = vmatpush1.msra.mxu0 0.0
      %1781 = vmatprep.subr.mxu0 0.0
      %1782 = vmatpush1.msra.mxu0 0.0
      %1783 = vmatprep.subr.mxu0 0.0
      %1784 = vmatpush1.msra.mxu0 0.0
      %1785 = vmatprep.subr.mxu0 0.0
      %1786 = vmatpush1.msra.mxu0 0.0
      %1787 = vmatprep.mubr.f32.mxu0 0.0
      %1788 = vmatmul.mubr.f32.gmra.mrb[0].mxu0 %v1644
      %v1789 = vpop.f32.mrb[0].mxu0
      %v1790 = vadd.f32 0.0, %v1789
      %v1791 = vpop.f32.mrb[0].mxu0
      %1792 = vmatprep.mubr.f32.mxu0 0.0
      %1793 = vmatmul.mubr.f32.gmra.mrb[0].mxu0 %v1646
      %v1794 = vpop.f32.mrb[0].mxu0
      %v1795 = vadd.f32 0.0, %v1794
      %v1796 = vpop.f32.mrb[0].mxu0
      %1797 = vmatprep.mubr.f32.mxu0 0.0
      %1798 = vmatmul.mubr.f32.gmra.mrb[0].mxu0 %v1648
      %v1799 = vpop.f32.mrb[0].mxu0
      %v1800 = vadd.f32 0.0, %v1799
      %v1801 = vpop.f32.mrb[0].mxu0
      %1802 = vmatprep.mubr.f32.mxu0 0.0
      %1803 = vmatmul.mubr.f32.gmra.mrb[0].mxu0 %v1650
      %v1804 = vpop.f32.mrb[0].mxu0
      %v1805 = vadd.f32 0.0, %v1804
      %v1806 = vpop.f32.mrb[0].mxu0
      %1807 = vmatprep.mubr.f32.mxu0 0.0
      %1808 = vmatmul.mubr.f32.gmra.mrb[0].mxu0 %v1652
      %v1809 = vpop.f32.mrb[0].mxu0
      %v1810 = vadd.f32 0.0, %v1809
      %v1811 = vpop.f32.mrb[0].mxu0
      %1812 = vmatprep.mubr.f32.mxu0 0.0
      %1813 = vmatmul.mubr.f32.gmra.mrb[0].mxu0 %v1654
      %v1814 = vpop.f32.mrb[0].mxu0
      %v1815 = vadd.f32 0.0, %v1814
      %v1816 = vpop.f32.mrb[0].mxu0
      %1817 = vmatprep.mubr.f32.mxu0 0.0
      %1818 = vmatmul.mubr.f32.gmra.mrb[0].mxu0 %v1656
      %v1819 = vpop.f32.mrb[0].mxu0
      %v1820 = vadd.f32 0.0, %v1819
      %v1821 = vpop.f32.mrb[0].mxu0
      %1822 = vmatprep.mubr.f32.mxu0 0.0
      %1823 = vmatmul.mubr.f32.gmra.mrb[0].mxu0 %v1658
      %v1824 = vpop.f32.mrb[0].mxu0
      %v1825 = vadd.f32 0.0, %v1824
      %v1826 = vpop.f32.mrb[0].mxu0
      %1827 = vmatprep.mubr.f32.mxu0 0.0
      %1828 = vmatmul.mubr.f32.gmra.mrb[0].mxu0 %v1660
      %v1829 = vpop.f32.mrb[0].mxu0
      %v1830 = vadd.f32 0.0, %v1829
      %v1831 = vpop.f32.mrb[0].mxu0
      %1832 = vmatprep.mubr.f32.mxu0 0.0
      %1833 = vmatmul.mubr.f32.gmra.mrb[0].mxu0 %v1662
      %v1834 = vpop.f32.mrb[0].mxu0
      %v1835 = vadd.f32 0.0, %v1834
      %v1836 = vpop.f32.mrb[0].mxu0
      %1837 = vmatprep.mubr.f32.mxu0 0.0
      %1838 = vmatmul.mubr.f32.gmra.mrb[0].mxu0 %v1664
      %v1839 = vpop.f32.mrb[0].mxu0
      %v1840 = vadd.f32 0.0, %v1839
      %v1841 = vpop.f32.mrb[0].mxu0
      %1842 = vmatprep.mubr.f32.mxu0 0.0
      %1843 = vmatmul.mubr.f32.gmra.mrb[0].mxu0 %v1666
      %v1844 = vpop.f32.mrb[0].mxu0
      %v1845 = vadd.f32 0.0, %v1844
      %v1846 = vpop.f32.mrb[0].mxu0
      %1847 = vmatprep.mubr.f32.mxu0 0.0
      %1848 = vmatmul.mubr.f32.gmra.mrb[0].mxu0 %v1668
      %v1849 = vpop.f32.mrb[0].mxu0
      %v1850 = vadd.f32 0.0, %v1849
      %v1851 = vpop.f32.mrb[0].mxu0
      %1852 = vmatprep.mubr.f32.mxu0 0.0
      %1853 = vmatmul.mubr.f32.gmra.mrb[0].mxu0 %v1670
      %v1854 = vpop.f32.mrb[0].mxu0
      %v1855 = vadd.f32 0.0, %v1854
      %v1856 = vpop.f32.mrb[0].mxu0
      %1857 = vmatprep.mubr.f32.mxu0 0.0
      %1858 = vmatmul.mubr.f32.gmra.mrb[0].mxu0 %v1672
      %v1859 = vpop.f32.mrb[0].mxu0
      %v1860 = vadd.f32 0.0, %v1859
      %v1861 = vpop.f32.mrb[0].mxu0
      %1862 = vmatprep.mubr.f32.mxu0 0.0
      %1863 = vmatmul.mubr.f32.gmra.mrb[0].mxu0 %v1674
      %v1864 = vpop.f32.mrb[0].mxu0
      %v1865 = vadd.f32 0.0, %v1864
      %v1866 = vpop.f32.mrb[0].mxu0
      %1867 = vmatprep.mubr.f32.mxu0 0.0
      %1868 = vmatmul.mubr.f32.gmra.mrb[0].mxu0 %v1676
      %v1869 = vpop.f32.mrb[0].mxu0
      %v1870 = vadd.f32 0.0, %v1869
      %v1871 = vpop.f32.mrb[0].mxu0
      %1872 = vmatprep.mubr.f32.mxu0 0.0
      %1873 = vmatmul.mubr.f32.gmra.mrb[0].mxu0 %v1678
      %v1874 = vpop.f32.mrb[0].mxu0
      %v1875 = vadd.f32 0.0, %v1874
      %v1876 = vpop.f32.mrb[0].mxu0
      %1877 = vmatprep.mubr.f32.mxu0 0.0
      %1878 = vmatmul.mubr.f32.gmra.mrb[0].mxu0 %v1680
      %v1879 = vpop.f32.mrb[0].mxu0
      %v1880 = vadd.f32 0.0, %v1879
      %v1881 = vpop.f32.mrb[0].mxu0
      %1882 = vmatprep.mubr.f32.mxu0 0.0
      %1883 = vmatmul.mubr.f32.gmra.mrb[0].mxu0 %v1682
      %v1884 = vpop.f32.mrb[0].mxu0
      %v1885 = vadd.f32 0.0, %v1884
      %v1886 = vpop.f32.mrb[0].mxu0
      %1887 = vmatprep.mubr.f32.mxu0 0.0
      %1888 = vmatmul.mubr.f32.gmra.mrb[0].mxu0 %v1684
      %v1889 = vpop.f32.mrb[0].mxu0
      %v1890 = vadd.f32 0.0, %v1889
      %v1891 = vpop.f32.mrb[0].mxu0
      %1892 = vmatprep.mubr.f32.mxu0 0.0
      %1893 = vmatmul.mubr.f32.gmra.mrb[0].mxu0 %v1686
      %v1894 = vpop.f32.mrb[0].mxu0
      %v1895 = vadd.f32 0.0, %v1894
      %v1896 = vpop.f32.mrb[0].mxu0
      %1897 = vmatprep.mubr.f32.mxu0 0.0
      %1898 = vmatmul.mubr.f32.gmra.mrb[0].mxu0 %v1688
      %v1899 = vpop.f32.mrb[0].mxu0
      %v1900 = vadd.f32 0.0, %v1899
      %v1901 = vpop.f32.mrb[0].mxu0
      %1902 = vmatprep.mubr.f32.mxu0 0.0
      %1903 = vmatmul.mubr.f32.gmra.mrb[0].mxu0 %v1690
      %v1904 = vpop.f32.mrb[0].mxu0
      %v1905 = vadd.f32 0.0, %v1904
      %v1906 = vpop.f32.mrb[0].mxu0
      %1907 = vmatprep.mubr.f32.mxu0 0.0
      %1908 = vmatmul.mubr.f32.gmra.mrb[0].mxu0 %v1692
      %v1909 = vpop.f32.mrb[0].mxu0
      %v1910 = vadd.f32 0.0, %v1909
      %v1911 = vpop.f32.mrb[0].mxu0
      %1912 = vmatprep.mubr.f32.mxu0 0.0
      %1913 = vmatmul.mubr.f32.gmra.mrb[0].mxu0 %v1694
      %v1914 = vpop.f32.mrb[0].mxu0
      %v1915 = vadd.f32 0.0, %v1914
      %v1916 = vpop.f32.mrb[0].mxu0
      %1917 = vmatprep.mubr.f32.mxu0 0.0
      %1918 = vmatmul.mubr.f32.gmra.mrb[0].mxu0 %v1696
      %v1919 = vpop.f32.mrb[0].mxu0
      %v1920 = vadd.f32 0.0, %v1919
      %v1921 = vpop.f32.mrb[0].mxu0
      %1922 = vmatprep.mubr.f32.mxu0 0.0
      %1923 = vmatmul.mubr.f32.gmra.mrb[0].mxu0 %v1698
      %v1924 = vpop.f32.mrb[0].mxu0
      %v1925 = vadd.f32 0.0, %v1924
      %v1926 = vpop.f32.mrb[0].mxu0
      %1927 = vmatprep.mubr.f32.mxu0 0.0
      %1928 = vmatmul.mubr.f32.gmra.mrb[0].mxu0 %v1700
      %v1929 = vpop.f32.mrb[0].mxu0
      %v1930 = vadd.f32 0.0, %v1929
      %v1931 = vpop.f32.mrb[0].mxu0
      %1932 = vmatprep.mubr.f32.mxu0 0.0
      %1933 = vmatmul.mubr.f32.gmra.mrb[0].mxu0 %v1702
      %v1934 = vpop.f32.mrb[0].mxu0
      %v1935 = vadd.f32 0.0, %v1934
      %v1936 = vpop.f32.mrb[0].mxu0
      %1937 = vmatprep.mubr.f32.mxu0 0.0
      %1938 = vmatmul.mubr.f32.gmra.mrb[0].mxu0 %v1704
      %v1939 = vpop.f32.mrb[0].mxu0
      %v1940 = vadd.f32 0.0, %v1939
      %v1941 = vpop.f32.mrb[0].mxu0
      %1942 = vmatprep.mubr.f32.mxu0 0.0
      %1943 = vmatmul.mubr.f32.gmra.mrb[0].mxu0 %v1706
      %v1944 = vpop.f32.mrb[0].mxu0
      %v1945 = vadd.f32 0.0, %v1944
      %v1946 = vpop.f32.mrb[0].mxu0
      %1947 = vdwg.mxu0
      %vm1948 = vcmask 31744
      %v1949 = vsel %vm1948, %v1790, -inf
      %1950 = vmax.xlane.f32.xlu0 %v1949
      %v1951 = vpop.xlane.xlu0 %1950
      %v1952 = vsel %vm1948, %v1795, -inf
      %1953 = vmax.xlane.f32.xlu0 %v1952
      %v1954 = vpop.xlane.xlu0 %1953
      %v1955 = vsel %vm1948, %v1800, -inf
      %1956 = vmax.xlane.f32.xlu0 %v1955
      %v1957 = vpop.xlane.xlu0 %1956
      %v1958 = vsel %vm1948, %v1805, -inf
      %1959 = vmax.xlane.f32.xlu0 %v1958
      %v1960 = vpop.xlane.xlu0 %1959
      %v1961 = vsel %vm1948, %v1810, -inf
      %1962 = vmax.xlane.f32.xlu0 %v1961
      %v1963 = vpop.xlane.xlu0 %1962
      %v1964 = vsel %vm1948, %v1815, -inf
      %1965 = vmax.xlane.f32.xlu0 %v1964
      %v1966 = vpop.xlane.xlu0 %1965
      %v1967 = vsel %vm1948, %v1820, -inf
      %1968 = vmax.xlane.f32.xlu0 %v1967
      %v1969 = vpop.xlane.xlu0 %1968
      %v1970 = vsel %vm1948, %v1825, -inf
      %1971 = vmax.xlane.f32.xlu0 %v1970
      %v1972 = vpop.xlane.xlu0 %1971
      %v1973 = vsel %vm1948, %v1830, -inf
      %1974 = vmax.xlane.f32.xlu0 %v1973
      %v1975 = vpop.xlane.xlu0 %1974
      %v1976 = vsel %vm1948, %v1835, -inf
      %1977 = vmax.xlane.f32.xlu0 %v1976
      %v1978 = vpop.xlane.xlu0 %1977
      %v1979 = vsel %vm1948, %v1840, -inf
      %1980 = vmax.xlane.f32.xlu0 %v1979
      %v1981 = vpop.xlane.xlu0 %1980
      %v1982 = vsel %vm1948, %v1845, -inf
      %1983 = vmax.xlane.f32.xlu0 %v1982
      %v1984 = vpop.xlane.xlu0 %1983
      %v1985 = vsel %vm1948, %v1850, -inf
      %1986 = vmax.xlane.f32.xlu0 %v1985
      %v1987 = vpop.xlane.xlu0 %1986
      %v1988 = vsel %vm1948, %v1855, -inf
      %1989 = vmax.xlane.f32.xlu0 %v1988
      %v1990 = vpop.xlane.xlu0 %1989
      %v1991 = vsel %vm1948, %v1860, -inf
      %1992 = vmax.xlane.f32.xlu0 %v1991
      %v1993 = vpop.xlane.xlu0 %1992
      %v1994 = vsel %vm1948, %v1865, -inf
      %1995 = vmax.xlane.f32.xlu0 %v1994
      %v1996 = vpop.xlane.xlu0 %1995
      %v1997 = vsel %vm1948, %v1870, -inf
      %1998 = vmax.xlane.f32.xlu0 %v1997
      %v1999 = vpop.xlane.xlu0 %1998
      %v2000 = vsel %vm1948, %v1875, -inf
      %2001 = vmax.xlane.f32.xlu0 %v2000
      %v2002 = vpop.xlane.xlu0 %2001
      %v2003 = vsel %vm1948, %v1880, -inf
      %2004 = vmax.xlane.f32.xlu0 %v2003
      %v2005 = vpop.xlane.xlu0 %2004
      %v2006 = vsel %vm1948, %v1885, -inf
      %2007 = vmax.xlane.f32.xlu0 %v2006
      %v2008 = vpop.xlane.xlu0 %2007
      %v2009 = vsel %vm1948, %v1890, -inf
      %2010 = vmax.xlane.f32.xlu0 %v2009
      %v2011 = vpop.xlane.xlu0 %2010
      %v2012 = vsel %vm1948, %v1895, -inf
      %2013 = vmax.xlane.f32.xlu0 %v2012
      %v2014 = vpop.xlane.xlu0 %2013
      %v2015 = vsel %vm1948, %v1900, -inf
      %2016 = vmax.xlane.f32.xlu0 %v2015
      %v2017 = vpop.xlane.xlu0 %2016
      %v2018 = vsel %vm1948, %v1905, -inf
      %2019 = vmax.xlane.f32.xlu0 %v2018
      %v2020 = vpop.xlane.xlu0 %2019
      %v2021 = vsel %vm1948, %v1910, -inf
      %2022 = vmax.xlane.f32.xlu0 %v2021
      %v2023 = vpop.xlane.xlu0 %2022
      %v2024 = vsel %vm1948, %v1915, -inf
      %2025 = vmax.xlane.f32.xlu0 %v2024
      %v2026 = vpop.xlane.xlu0 %2025
      %v2027 = vsel %vm1948, %v1920, -inf
      %2028 = vmax.xlane.f32.xlu0 %v2027
      %v2029 = vpop.xlane.xlu0 %2028
      %v2030 = vsel %vm1948, %v1925, -inf
      %2031 = vmax.xlane.f32.xlu0 %v2030
      %v2032 = vpop.xlane.xlu0 %2031
      %v2033 = vsel %vm1948, %v1930, -inf
      %2034 = vmax.xlane.f32.xlu0 %v2033
      %v2035 = vpop.xlane.xlu0 %2034
      %v2036 = vsel %vm1948, %v1935, -inf
      %2037 = vmax.xlane.f32.xlu0 %v2036
      %v2038 = vpop.xlane.xlu0 %2037
      %v2039 = vsel %vm1948, %v1940, -inf
      %2040 = vmax.xlane.f32.xlu0 %v2039
      %v2041 = vpop.xlane.xlu0 %2040
      %v2042 = vsel %vm1948, %v1945, -inf
      %2043 = vmax.xlane.f32.xlu0 %v2042
      %v2044 = vpop.xlane.xlu0 %2043
      %v2045 = vsub.f32 %v1790, %v1951
      %v2046 = vsub.f32 %v1795, %v1954
      %v2047 = vsub.f32 %v1800, %v1957
      %v2048 = vsub.f32 %v1805, %v1960
      %v2049 = vsub.f32 %v1810, %v1963
      %v2050 = vsub.f32 %v1815, %v1966
      %v2051 = vsub.f32 %v1820, %v1969
      %v2052 = vsub.f32 %v1825, %v1972
      %v2053 = vsub.f32 %v1830, %v1975
      %v2054 = vsub.f32 %v1835, %v1978
      %v2055 = vsub.f32 %v1840, %v1981
      %v2056 = vsub.f32 %v1845, %v1984
      %v2057 = vsub.f32 %v1850, %v1987
      %v2058 = vsub.f32 %v1855, %v1990
      %v2059 = vsub.f32 %v1860, %v1993
      %v2060 = vsub.f32 %v1865, %v1996
      %v2061 = vsub.f32 %v1870, %v1999
      %v2062 = vsub.f32 %v1875, %v2002
      %v2063 = vsub.f32 %v1880, %v2005
      %v2064 = vsub.f32 %v1885, %v2008
      %v2065 = vsub.f32 %v1890, %v2011
      %v2066 = vsub.f32 %v1895, %v2014
      %v2067 = vsub.f32 %v1900, %v2017
      %v2068 = vsub.f32 %v1905, %v2020
      %v2069 = vsub.f32 %v1910, %v2023
      %v2070 = vsub.f32 %v1915, %v2026
      %v2071 = vsub.f32 %v1920, %v2029
      %v2072 = vsub.f32 %v1925, %v2032
      %v2073 = vsub.f32 %v1930, %v2035
      %v2074 = vsub.f32 %v1935, %v2038
      %v2075 = vsub.f32 %v1940, %v2041
      %v2076 = vsub.f32 %v1945, %v2044
      %v2077 = vmul.f32 %v2045, 1.442695
      %v2078 = vpow.pop %v2077
      %v2079 = vmul.f32 %v2046, 1.442695
      %v2080 = vpow.pop %v2079
      %v2081 = vmul.f32 %v2047, 1.442695
      %v2082 = vpow.pop %v2081
      %v2083 = vmul.f32 %v2048, 1.442695
      %v2084 = vpow.pop %v2083
      %v2085 = vmul.f32 %v2049, 1.442695
      %v2086 = vpow.pop %v2085
      %v2087 = vmul.f32 %v2050, 1.442695
      %v2088 = vpow.pop %v2087
      %v2089 = vmul.f32 %v2051, 1.442695
      %v2090 = vpow.pop %v2089
      %v2091 = vmul.f32 %v2052, 1.442695
      %v2092 = vpow.pop %v2091
      %v2093 = vmul.f32 %v2053, 1.442695
      %v2094 = vpow.pop %v2093
      %v2095 = vmul.f32 %v2054, 1.442695
      %v2096 = vpow.pop %v2095
      %v2097 = vmul.f32 %v2055, 1.442695
      %v2098 = vpow.pop %v2097
      %v2099 = vmul.f32 %v2056, 1.442695
      %v2100 = vpow.pop %v2099
      %v2101 = vmul.f32 %v2057, 1.442695
      %v2102 = vpow.pop %v2101
      %v2103 = vmul.f32 %v2058, 1.442695
      %v2104 = vpow.pop %v2103
      %v2105 = vmul.f32 %v2059, 1.442695
      %v2106 = vpow.pop %v2105
      %v2107 = vmul.f32 %v2060, 1.442695
      %v2108 = vpow.pop %v2107
      %v2109 = vmul.f32 %v2061, 1.442695
      %v2110 = vpow.pop %v2109
      %v2111 = vmul.f32 %v2062, 1.442695
      %v2112 = vpow.pop %v2111
      %v2113 = vmul.f32 %v2063, 1.442695
      %v2114 = vpow.pop %v2113
      %v2115 = vmul.f32 %v2064, 1.442695
      %v2116 = vpow.pop %v2115
      %v2117 = vmul.f32 %v2065, 1.442695
      %v2118 = vpow.pop %v2117
      %v2119 = vmul.f32 %v2066, 1.442695
      %v2120 = vpow.pop %v2119
      %v2121 = vmul.f32 %v2067, 1.442695
      %v2122 = vpow.pop %v2121
      %v2123 = vmul.f32 %v2068, 1.442695
      %v2124 = vpow.pop %v2123
      %v2125 = vmul.f32 %v2069, 1.442695
      %v2126 = vpow.pop %v2125
      %v2127 = vmul.f32 %v2070, 1.442695
      %v2128 = vpow.pop %v2127
      %v2129 = vmul.f32 %v2071, 1.442695
      %v2130 = vpow.pop %v2129
      %v2131 = vmul.f32 %v2072, 1.442695
      %v2132 = vpow.pop %v2131
      %v2133 = vmul.f32 %v2073, 1.442695
      %v2134 = vpow.pop %v2133
      %v2135 = vmul.f32 %v2074, 1.442695
      %v2136 = vpow.pop %v2135
      %v2137 = vmul.f32 %v2075, 1.442695
      %v2138 = vpow.pop %v2137
      %v2139 = vmul.f32 %v2076, 1.442695
      %v2140 = vpow.pop %v2139
      %v2141 = vsel %vm1948, %v2078, 0.0
      %2142 = vadd.xlane.f32.xlu0 %v2141
      %v2143 = vpop.xlane.xlu0 %2142
      %v2144 = vsel %vm1948, %v2080, 0.0
      %2145 = vadd.xlane.f32.xlu0 %v2144
      %v2146 = vpop.xlane.xlu0 %2145
      %v2147 = vsel %vm1948, %v2082, 0.0
      %2148 = vadd.xlane.f32.xlu0 %v2147
      %v2149 = vpop.xlane.xlu0 %2148
      %v2150 = vsel %vm1948, %v2084, 0.0
      %2151 = vadd.xlane.f32.xlu0 %v2150
      %v2152 = vpop.xlane.xlu0 %2151
      %v2153 = vsel %vm1948, %v2086, 0.0
      %2154 = vadd.xlane.f32.xlu0 %v2153
      %v2155 = vpop.xlane.xlu0 %2154
      %v2156 = vsel %vm1948, %v2088, 0.0
      %2157 = vadd.xlane.f32.xlu0 %v2156
      %v2158 = vpop.xlane.xlu0 %2157
      %v2159 = vsel %vm1948, %v2090, 0.0
      %2160 = vadd.xlane.f32.xlu0 %v2159
      %v2161 = vpop.xlane.xlu0 %2160
      %v2162 = vsel %vm1948, %v2092, 0.0
      %2163 = vadd.xlane.f32.xlu0 %v2162
      %v2164 = vpop.xlane.xlu0 %2163
      %v2165 = vsel %vm1948, %v2094, 0.0
      %2166 = vadd.xlane.f32.xlu0 %v2165
      %v2167 = vpop.xlane.xlu0 %2166
      %v2168 = vsel %vm1948, %v2096, 0.0
      %2169 = vadd.xlane.f32.xlu0 %v2168
      %v2170 = vpop.xlane.xlu0 %2169
      %v2171 = vsel %vm1948, %v2098, 0.0
      %2172 = vadd.xlane.f32.xlu0 %v2171
      %v2173 = vpop.xlane.xlu0 %2172
      %v2174 = vsel %vm1948, %v2100, 0.0
      %2175 = vadd.xlane.f32.xlu0 %v2174
      %v2176 = vpop.xlane.xlu0 %2175
      %v2177 = vsel %vm1948, %v2102, 0.0
      %2178 = vadd.xlane.f32.xlu0 %v2177
      %v2179 = vpop.xlane.xlu0 %2178
      %v2180 = vsel %vm1948, %v2104, 0.0
      %2181 = vadd.xlane.f32.xlu0 %v2180
      %v2182 = vpop.xlane.xlu0 %2181
      %v2183 = vsel %vm1948, %v2106, 0.0
      %2184 = vadd.xlane.f32.xlu0 %v2183
      %v2185 = vpop.xlane.xlu0 %2184
      %v2186 = vsel %vm1948, %v2108, 0.0
      %2187 = vadd.xlane.f32.xlu0 %v2186
      %v2188 = vpop.xlane.xlu0 %2187
      %v2189 = vsel %vm1948, %v2110, 0.0
      %2190 = vadd.xlane.f32.xlu0 %v2189
      %v2191 = vpop.xlane.xlu0 %2190
      %v2192 = vsel %vm1948, %v2112, 0.0
      %2193 = vadd.xlane.f32.xlu0 %v2192
      %v2194 = vpop.xlane.xlu0 %2193
      %v2195 = vsel %vm1948, %v2114, 0.0
      %2196 = vadd.xlane.f32.xlu0 %v2195
      %v2197 = vpop.xlane.xlu0 %2196
      %v2198 = vsel %vm1948, %v2116, 0.0
      %2199 = vadd.xlane.f32.xlu0 %v2198
      %v2200 = vpop.xlane.xlu0 %2199
      %v2201 = vsel %vm1948, %v2118, 0.0
      %2202 = vadd.xlane.f32.xlu0 %v2201
      %v2203 = vpop.xlane.xlu0 %2202
      %v2204 = vsel %vm1948, %v2120, 0.0
      %2205 = vadd.xlane.f32.xlu0 %v2204
      %v2206 = vpop.xlane.xlu0 %2205
      %v2207 = vsel %vm1948, %v2122, 0.0
      %2208 = vadd.xlane.f32.xlu0 %v2207
      %v2209 = vpop.xlane.xlu0 %2208
      %v2210 = vsel %vm1948, %v2124, 0.0
      %2211 = vadd.xlane.f32.xlu0 %v2210
      %v2212 = vpop.xlane.xlu0 %2211
      %v2213 = vsel %vm1948, %v2126, 0.0
      %2214 = vadd.xlane.f32.xlu0 %v2213
      %v2215 = vpop.xlane.xlu0 %2214
      %v2216 = vsel %vm1948, %v2128, 0.0
      %2217 = vadd.xlane.f32.xlu0 %v2216
      %v2218 = vpop.xlane.xlu0 %2217
      %v2219 = vsel %vm1948, %v2130, 0.0
      %2220 = vadd.xlane.f32.xlu0 %v2219
      %v2221 = vpop.xlane.xlu0 %2220
      %v2222 = vsel %vm1948, %v2132, 0.0
      %2223 = vadd.xlane.f32.xlu0 %v2222
      %v2224 = vpop.xlane.xlu0 %2223
      %v2225 = vsel %vm1948, %v2134, 0.0
      %2226 = vadd.xlane.f32.xlu0 %v2225
      %v2227 = vpop.xlane.xlu0 %2226
      %v2228 = vsel %vm1948, %v2136, 0.0
      %2229 = vadd.xlane.f32.xlu0 %v2228
      %v2230 = vpop.xlane.xlu0 %2229
      %v2231 = vsel %vm1948, %v2138, 0.0
      %2232 = vadd.xlane.f32.xlu0 %v2231
      %v2233 = vpop.xlane.xlu0 %2232
      %v2234 = vsel %vm1948, %v2140, 0.0
      %2235 = vadd.xlane.f32.xlu0 %v2234
      %v2236 = vpop.xlane.xlu0 %2235
      %v2237 = vrcp.pop %v2143
      %v2238 = vmul.f32 %v2078, %v2237
      %v2239 = vrcp.pop %v2146
      %v2240 = vmul.f32 %v2080, %v2239
      %v2241 = vrcp.pop %v2149
      %v2242 = vmul.f32 %v2082, %v2241
      %v2243 = vrcp.pop %v2152
      %v2244 = vmul.f32 %v2084, %v2243
      %v2245 = vrcp.pop %v2155
      %v2246 = vmul.f32 %v2086, %v2245
      %v2247 = vrcp.pop %v2158
      %v2248 = vmul.f32 %v2088, %v2247
      %v2249 = vrcp.pop %v2161
      %v2250 = vmul.f32 %v2090, %v2249
      %v2251 = vrcp.pop %v2164
      %v2252 = vmul.f32 %v2092, %v2251
      %v2253 = vrcp.pop %v2167
      %v2254 = vmul.f32 %v2094, %v2253
      %v2255 = vrcp.pop %v2170
      %v2256 = vmul.f32 %v2096, %v2255
      %v2257 = vrcp.pop %v2173
      %v2258 = vmul.f32 %v2098, %v2257
      %v2259 = vrcp.pop %v2176
      %v2260 = vmul.f32 %v2100, %v2259
      %v2261 = vrcp.pop %v2179
      %v2262 = vmul.f32 %v2102, %v2261
      %v2263 = vrcp.pop %v2182
      %v2264 = vmul.f32 %v2104, %v2263
      %v2265 = vrcp.pop %v2185
      %v2266 = vmul.f32 %v2106, %v2265
      %v2267 = vrcp.pop %v2188
      %v2268 = vmul.f32 %v2108, %v2267
      %v2269 = vrcp.pop %v2191
      %v2270 = vmul.f32 %v2110, %v2269
      %v2271 = vrcp.pop %v2194
      %v2272 = vmul.f32 %v2112, %v2271
      %v2273 = vrcp.pop %v2197
      %v2274 = vmul.f32 %v2114, %v2273
      %v2275 = vrcp.pop %v2200
      %v2276 = vmul.f32 %v2116, %v2275
      %v2277 = vrcp.pop %v2203
      %v2278 = vmul.f32 %v2118, %v2277
      %v2279 = vrcp.pop %v2206
      %v2280 = vmul.f32 %v2120, %v2279
      %v2281 = vrcp.pop %v2209
      %v2282 = vmul.f32 %v2122, %v2281
      %v2283 = vrcp.pop %v2212
      %v2284 = vmul.f32 %v2124, %v2283
      %v2285 = vrcp.pop %v2215
      %v2286 = vmul.f32 %v2126, %v2285
      %v2287 = vrcp.pop %v2218
      %v2288 = vmul.f32 %v2128, %v2287
      %v2289 = vrcp.pop %v2221
      %v2290 = vmul.f32 %v2130, %v2289
      %v2291 = vrcp.pop %v2224
      %v2292 = vmul.f32 %v2132, %v2291
      %v2293 = vrcp.pop %v2227
      %v2294 = vmul.f32 %v2134, %v2293
      %v2295 = vrcp.pop %v2230
      %v2296 = vmul.f32 %v2136, %v2295
      %v2297 = vrcp.pop %v2233
      %v2298 = vmul.f32 %v2138, %v2297
      %v2299 = vrcp.pop %v2236
      %v2300 = vmul.f32 %v2140, %v2299
      %2301 = vst.msk [vmem:[%s308] sm:$0xff] %vm1948, %v2238
      %2302 = vst.msk [vmem:[%s308 + $0x8] sm:$0xff] %vm1948, %v2240
      %2303 = vst.msk [vmem:[%s308 + $0x10] sm:$0xff] %vm1948, %v2242
      %2304 = vst.msk [vmem:[%s308 + $0x18] sm:$0xff] %vm1948, %v2244
      %2305 = vst.msk [vmem:[%s308 + $0x20] sm:$0xff] %vm1948, %v2246
      %2306 = vst.msk [vmem:[%s308 + $0x28] sm:$0xff] %vm1948, %v2248
      %2307 = vst.msk [vmem:[%s308 + $0x30] sm:$0xff] %vm1948, %v2250
      %2308 = vst.msk [vmem:[%s308 + $0x38] sm:$0xff] %vm1948, %v2252
      %2309 = vst.msk [vmem:[%s308 + $0x40] sm:$0xff] %vm1948, %v2254
      %2310 = vst.msk [vmem:[%s308 + $0x48] sm:$0xff] %vm1948, %v2256
      %2311 = vst.msk [vmem:[%s308 + $0x50] sm:$0xff] %vm1948, %v2258
      %2312 = vst.msk [vmem:[%s308 + $0x58] sm:$0xff] %vm1948, %v2260
      %2313 = vst.msk [vmem:[%s308 + $0x60] sm:$0xff] %vm1948, %v2262
      %2314 = vst.msk [vmem:[%s308 + $0x68] sm:$0xff] %vm1948, %v2264
      %2315 = vst.msk [vmem:[%s308 + $0x70] sm:$0xff] %vm1948, %v2266
      %2316 = vst.msk [vmem:[%s308 + $0x78] sm:$0xff] %vm1948, %v2268
      %2317 = vst.msk [vmem:[%s308 + $0x80] sm:$0xff] %vm1948, %v2270
      %2318 = vst.msk [vmem:[%s308 + $0x88] sm:$0xff] %vm1948, %v2272
      %2319 = vst.msk [vmem:[%s308 + $0x90] sm:$0xff] %vm1948, %v2274
      %2320 = vst.msk [vmem:[%s308 + $0x98] sm:$0xff] %vm1948, %v2276
      %2321 = vst.msk [vmem:[%s308 + $0xa0] sm:$0xff] %vm1948, %v2278
      %2322 = vst.msk [vmem:[%s308 + $0xa8] sm:$0xff] %vm1948, %v2280
      %2323 = vst.msk [vmem:[%s308 + $0xb0] sm:$0xff] %vm1948, %v2282
      %2324 = vst.msk [vmem:[%s308 + $0xb8] sm:$0xff] %vm1948, %v2284
      %2325 = vst.msk [vmem:[%s308 + $0xc0] sm:$0xff] %vm1948, %v2286
      %2326 = vst.msk [vmem:[%s308 + $0xc8] sm:$0xff] %vm1948, %v2288
      %2327 = vst.msk [vmem:[%s308 + $0xd0] sm:$0xff] %vm1948, %v2290
      %2328 = vst.msk [vmem:[%s308 + $0xd8] sm:$0xff] %vm1948, %v2292
      %2329 = vst.msk [vmem:[%s308 + $0xe0] sm:$0xff] %vm1948, %v2294
      %2330 = vst.msk [vmem:[%s308 + $0xe8] sm:$0xff] %vm1948, %v2296
      %2331 = vst.msk [vmem:[%s308 + $0xf0] sm:$0xff] %vm1948, %v2298
      %2332 = vst.msk [vmem:[%s308 + $0xf8] sm:$0xff] %vm1948, %v2300
      %s2333 = smul.u32 32, %s20
      %p2334 = scmp.lt.s32.totalorder %s2333, 63
      %s2335 = scalar_select %p2334, %s2333, 63
      %s2336 = smul.addr %s2335, 8
      %s2337 = scalar_lea.vmem %s8, %s2336
      // Predicated region
      $region53: #{tpu_custom_call.1} parent=51 // pred_check
        %p2338 = pneg %p211
      $region54: #{tpu_custom_call.1} parent=51 // pred_check_branch
        %2340 = sbr.rel (%p2338) target = $region56
      $region55: #{tpu_custom_call.1} parent=51 // pred_region
        %s2341 = smul.u32 32, %s20
      $region56: #{tpu_custom_call.1} parent=51 // pred_fallthru
        _
    $region52: #{tpu_custom_call.1} parent=5 // pred_fallthru
      _
    %p2342 = scmp.le.s32.totalorder 2, %s15
    // Predicated region
    $region57: #{tpu_custom_call.1} parent=5 // pred_check
      %p2343 = pneg %p2342
    $region58: #{tpu_custom_call.1} parent=5 // pred_check_branch
      %2345 = sbr.rel (%p2343) target = $region60
    $region59: #{tpu_custom_call.1} parent=5 // pred_region
      %s2346 = ssub.s32 %s15, 2
      // Predicated region
      $region61: #{tpu_custom_call.1} parent=59 // pred_check
        %p2347 = pneg %p217
      $region62: #{tpu_custom_call.1} parent=59 // pred_check_branch
        %2349 = sbr.rel (%p2347) target = $region64
      $region63: #{tpu_custom_call.1} parent=59 // pred_region
        %s2350 = smul.u32 32, %s21
        %p2351 = scmp.lt.s32.totalorder %s2350, 63
        %s2352 = scalar_select %p2351, %s2350, 63
        %s2353 = smul.addr %s2352, 8
        %s2354 = scalar_lea.vmem %s8, %s2353
      $region64: #{tpu_custom_call.1} parent=59 // pred_fallthru
        _
    $region60: #{tpu_custom_call.1} parent=5 // pred_fallthru
      _
  $region6: #{tpu_custom_call.1} parent=0 // loop_footer
    %s19 = sadd.s32 1, %s15
  $region7: #{tpu_custom_call.1} parent=0 // loop_footer_branch
    %14 = sbr.rel target = $region3
  $region8: #{tpu_custom_call.1} parent=0 // loop_exit
    _

</llo_original>
